<compile_context>
chip_gen: v7x
topology: tpu7x:2x2x1
jax: 0.10.0
libtpu: 0.0.40
codegen_flags: <defaults>
</compile_context>

<pallas_src>
from functools import partial

import jax
import jax.numpy as jnp
from jax.experimental import pallas as pl
from jax.experimental.pallas import tpu as pltpu


def _round_up(x, m):
    return (x + m - 1) // m * m


def _vmem_limit_bytes():
    """Generation-aware scoped-VMEM limit (headroom below physical VMEM)."""
    cap = 128 * 1024 * 1024                      # v5e / v6e physical
    try:
        cap = int(getattr(pltpu.get_tpu_info(), "vmem_capacity_bytes", cap))
    except Exception:
        pass
    # ~96 MiB on 128-MiB parts (v5e/v6e), ~48 MiB on v7x (64 MiB physical).
    return min(96 * 1024 * 1024, cap * 3 // 4)


def _partial_stats(y, sum_ref, sq_ref):
    """Write per-tile channel sum / sum-of-squares into an (8, C) block.

    Row 0 carries the partial sums, rows 1..7 are zero, so a plain sum over
    axis 0 of the stacked per-tile blocks yields the global statistics.
    """
    c = y.shape[-1]
    row0 = jax.lax.broadcasted_iota(jnp.int32, (8, c), 0) == 0
    sum_ref[...] = jnp.where(row0, jnp.sum(y, axis=0, keepdims=True), 0.0)
    sq_ref[...] = jnp.where(row0, jnp.sum(y * y, axis=0, keepdims=True), 0.0)


# ---------------------------------------------------------------------------
# Pass 1 (single K tile, common case): matmul + partial stats, no scratch.
# Grid (n_m,), fully 'parallel'.
# ---------------------------------------------------------------------------
def _conv_stats_kernel(p_ref, w_ref, y_ref, sum_ref, sq_ref):
    y = jnp.dot(p_ref[...], w_ref[...], preferred_element_type=jnp.float32)
    y_ref[...] = y.astype(y_ref.dtype)           # bf16 intermediate by default
    _partial_stats(y, sum_ref, sq_ref)


# ---------------------------------------------------------------------------
# Pass 1 (multi K tile): f32 VMEM accumulator over the K reduction axis.
# Grid (n_m, n_k) with semantics ('parallel', 'arbitrary').
# ---------------------------------------------------------------------------
def _conv_stats_acc_kernel(p_ref, w_ref, y_ref, sum_ref, sq_ref, acc_ref, *,
                           tk, w_resident):
    kk = pl.program_id(1)
    nk = pl.num_programs(1)

    @pl.when(kk == 0)
    def _():
        acc_ref[...] = jnp.zeros_like(acc_ref)

    if w_resident:
        # Whole weight stays resident in VMEM (constant index_map); slice the
        # current K chunk instead of re-streaming a (tk, C) block per step.
        k0 = pl.multiple_of(kk * tk, tk)
        w = w_ref[pl.ds(k0, tk), :]
    else:
        w = w_ref[...]
    acc_ref[...] += jnp.dot(p_ref[...], w, preferred_element_type=jnp.float32)

    @pl.when(kk == nk - 1)
    def _():
        y = acc_ref[...]
        y_ref[...] = y.astype(y_ref.dtype)
        _partial_stats(y, sum_ref, sq_ref)


# ---------------------------------------------------------------------------
# Pass 2: BatchNorm (training-mode batch stats) affine + ReLU, parallel over M.
# NOTE: single-pass E[x^2]-E[x]^2 variance in f32 (clamped at 0); a two-pass
# variance would be exact but needs an extra sweep over the activations.
# ---------------------------------------------------------------------------
def _bn_relu_kernel(y_ref, sum_ref, sq_ref, gamma_ref, beta_ref, o_ref, *,
                    inv_m, eps):
    mean = sum_ref[...] * inv_m                        # (1, C) f32
    var = jnp.maximum(sq_ref[...] * inv_m - mean * mean, 0.0)
    scale = gamma_ref[...] * jax.lax.rsqrt(var + eps)
    shift = beta_ref[...] - mean * scale
    y = y_ref[...].astype(jnp.float32)
    o_ref[...] = jnp.maximum(y * scale + shift, 0.0)


# ---------------------------------------------------------------------------
# im2col (wrapper-side, bf16).  k==1 is a pure NCHW->rows transpose.
# ---------------------------------------------------------------------------
def _im2col(x, k, s, p, d, out_dtype):
    """x: [N, C, H, W] -> patches [N*Hout*Wout, C*k*k] (C slowest, then kh, kw)."""
    N, C, H, W = x.shape
    Hout = (H + 2 * p - d * (k - 1) - 1) // s + 1
    Wout = (W + 2 * p - d * (k - 1) - 1) // s + 1
    xp = jnp.pad(x, ((0, 0), (0, 0), (p, p), (p, p))) if p else x
    if k == 1:
        patch = xp[:, :, 0:(Hout - 1) * s + 1:s, 0:(Wout - 1) * s + 1:s]
        patches = patch.transpose(0, 2, 3, 1).reshape(N * Hout * Wout, C)
        return patches.astype(out_dtype), Hout, Wout
    # TODO(synk): for k>1 the k*k-expanded patch matrix is still materialized
    # once in HBM by XLA; an in-kernel halo / shifted-slice construction from
    # an NHWC tile would cut the input-side HBM traffic ~k*k-fold.
    cols = []
    for i in range(k):
        for j in range(k):
            cols.append(xp[:, :,
                           i * d: i * d + (Hout - 1) * s + 1: s,
                           j * d: j * d + (Wout - 1) * s + 1: s])
    patches = jnp.stack(cols, axis=0)                  # [k*k, N, C, Ho, Wo]
    patches = patches.transpose(1, 3, 4, 2, 0)         # [N, Ho, Wo, C, k*k]
    patches = patches.reshape(N * Hout * Wout, C * k * k)
    return patches.astype(out_dtype), Hout, Wout


# ---------------------------------------------------------------------------
# Wrapper
# ---------------------------------------------------------------------------
@partial(jax.jit, static_argnames=("k", "s", "p", "d", "eps", "tm", "max_tk",
                                   "w_resident_max_bytes", "inter_dtype",
                                   "channels_last"))
def conv_bn_relu(x, weight, bias=None, gamma=None, beta=None, *,
                 k=1, s=1, p=0, d=1, eps=1e-5, tm=1024, max_tk=2048,
                 w_resident_max_bytes=8 * 1024 * 1024,
                 inter_dtype=jnp.bfloat16, channels_last=False):
    """Pallas equivalent of Conv.forward (Conv2d -> BN(batch stats) -> ReLU).

    x: [N, C_in, H, W] f32 (NCHW); weight: [C_out, C_in, k, k] (OIHW).
    `bias` is accepted for API parity but is mathematically a no-op: the
    training-mode BatchNorm mean subtraction cancels any constant bias.
    `inter_dtype` is the conv-intermediate storage dtype (bf16 halves the
    HBM traffic between the two passes; statistics stay f32 either way).
    """
    del bias  # exactly cancelled by the batch-mean subtraction
    N = x.shape[0]
    out_c = weight.shape[0]

    patches, Hout, Wout = _im2col(x.astype(jnp.float32), k, s, p, d,
                                  jnp.bfloat16)
    M, K = patches.shape

    # --- pad to lane/sublane-friendly shapes --------------------------------
    C_pad = _round_up(out_c, 128)                # dense lane dim (weight/output)
    K128 = _round_up(K, 128)
    if K128 <= max_tk:                           # single K tile (common case)
        tk = K_pad = K128
    else:                                        # deep K: tk >= 256 preferred
        tk = min(512, _round_up(max_tk, 128))
        K_pad = _round_up(K, tk)

    tm_ = min(tm, _round_up(M, 256))
    tm_ = _round_up(tm_, 16)                     # bf16 sublane packing
    M_pad = _round_up(M, tm_)
    n_m = M_pad // tm_
    n_k = K_pad // tk

    patches_p = jnp.pad(patches, ((0, M_pad - M), (0, K_pad - K)))
    w2d = weight.reshape(out_c, K).T.astype(jnp.bfloat16)         # [K, C_out]
    w_p = jnp.pad(w2d, ((0, K_pad - K), (0, C_pad - out_c)))
    g_p = jnp.pad(gamma.reshape(1, out_c).astype(jnp.float32),
                  ((0, 0), (0, C_pad - out_c)), constant_values=1.0)
    b_p = jnp.pad(beta.reshape(1, out_c).astype(jnp.float32),
                  ((0, 0), (0, C_pad - out_c)))

    vmem_limit = _vmem_limit_bytes()
    w_resident = (n_k == 1) or (K_pad * C_pad * 2 <= w_resident_max_bytes)

    # --- pass 1: conv matmul + per-M-tile partial channel stats -------------
    if n_k == 1:
        kernel = _conv_stats_kernel
        grid = (n_m,)
        in_specs = [pl.BlockSpec((tm_, K_pad), lambda i: (i, 0)),
                    pl.BlockSpec((K_pad, C_pad), lambda i: (0, 0))]
        out_specs = [pl.BlockSpec((tm_, C_pad), lambda i: (i, 0)),
                     pl.BlockSpec((8, C_pad), lambda i: (i, 0)),
                     pl.BlockSpec((8, C_pad), lambda i: (i, 0))]
        scratch = []
        dims = ("parallel",)
    else:
        kernel = partial(_conv_stats_acc_kernel, tk=tk, w_resident=w_resident)
        grid = (n_m, n_k)
        w_spec = (pl.BlockSpec((K_pad, C_pad), lambda i, kk: (0, 0))
                  if w_resident else
                  pl.BlockSpec((tk, C_pad), lambda i, kk: (kk, 0)))
        in_specs = [pl.BlockSpec((tm_, tk), lambda i, kk: (i, kk)), w_spec]
        out_specs = [pl.BlockSpec((tm_, C_pad), lambda i, kk: (i, 0)),
                     pl.BlockSpec((8, C_pad), lambda i, kk: (i, 0)),
                     pl.BlockSpec((8, C_pad), lambda i, kk: (i, 0))]
        scratch = [pltpu.VMEM((tm_, C_pad), jnp.float32)]
        dims = ("parallel", "arbitrary")

    y_conv, psum, psq = pl.pallas_call(
        kernel,
        out_shape=(jax.ShapeDtypeStruct((M_pad, C_pad), inter_dtype),
                   jax.ShapeDtypeStruct((8 * n_m, C_pad), jnp.float32),
                   jax.ShapeDtypeStruct((8 * n_m, C_pad), jnp.float32)),
        grid_spec=pltpu.PrefetchScalarGridSpec(
            num_scalar_prefetch=0, grid=grid,
            in_specs=in_specs, out_specs=out_specs, scratch_shapes=scratch),
        compiler_params=pltpu.CompilerParams(
            dimension_semantics=dims, vmem_limit_bytes=vmem_limit),
        cost_estimate=pl.CostEstimate(
            flops=2 * M_pad * K_pad * C_pad,
            transcendentals=0,
            bytes_accessed=(M_pad * K_pad * 2 + K_pad * C_pad * 2
                            + M_pad * C_pad * jnp.dtype(inter_dtype).itemsize)),
    )(patches_p, w_p)

    # Global per-channel batch statistics: tiny (8*n_m, C) reduce in XLA.
    csum = jnp.sum(psum, axis=0, keepdims=True)
    csq = jnp.sum(psq, axis=0, keepdims=True)

    # --- pass 2: BN affine + ReLU, streaming, fully parallel over M ----------
    out2d = pl.pallas_call(
        partial(_bn_relu_kernel, inv_m=1.0 / float(M), eps=float(eps)),
        out_shape=jax.ShapeDtypeStruct((M_pad, C_pad), jnp.float32),
        grid_spec=pltpu.PrefetchScalarGridSpec(
            num_scalar_prefetch=0, grid=(n_m,),
            in_specs=[pl.BlockSpec((tm_, C_pad), lambda i: (i, 0)),
                      pl.BlockSpec((1, C_pad), lambda i: (0, 0)),
                      pl.BlockSpec((1, C_pad), lambda i: (0, 0)),
                      pl.BlockSpec((1, C_pad), lambda i: (0, 0)),
                      pl.BlockSpec((1, C_pad), lambda i: (0, 0))],
            out_specs=pl.BlockSpec((tm_, C_pad), lambda i: (i, 0))),
        compiler_params=pltpu.CompilerParams(
            dimension_semantics=("parallel",), vmem_limit_bytes=vmem_limit),
    )(y_conv, csum, csq, g_p, b_p)

    out = out2d[:M, :out_c].reshape(N, Hout, Wout, out_c)
    if channels_last:
        return out
    # NOTE: this NHWC->NCHW transpose costs an extra HBM round trip; pass
    # channels_last=True when the downstream consumer accepts NHWC.
    return out.transpose(0, 3, 1, 2)


# ---------------------------------------------------------------------------
# Plain-JAX reference (lax conv + training-mode BN + ReLU).  Conv inputs are
# bf16-quantized to mirror the kernel's MXU dtype; the intermediate stays f32.
# ---------------------------------------------------------------------------
def _reference(x, weight, bias, gamma, beta, *, k, s, p, d, eps=1e-5):
    xq = x.astype(jnp.bfloat16).astype(jnp.float32)
    wq = weight.astype(jnp.bfloat16).astype(jnp.float32)
    y = jax.lax.conv_general_dilated(
        xq, wq, window_strides=(s, s), padding=[(p, p), (p, p)],
        rhs_dilation=(d, d), dimension_numbers=("NCHW", "OIHW", "NCHW"))
    y = y + bias.reshape(1, -1, 1, 1)   # cancelled by the BN mean subtraction
    mean = jnp.mean(y, axis=(0, 2, 3), keepdims=True)
    var = jnp.mean(jnp.square(y - mean), axis=(0, 2, 3), keepdims=True)
    y = (y - mean) * jax.lax.rsqrt(var + eps)
    y = y * gamma.reshape(1, -1, 1, 1) + beta.reshape(1, -1, 1, 1)
    return jnp.maximum(y, 0.0)


if __name__ == "__main__":
    key = jax.random.PRNGKey(0)
    (k_x, k_x2, k_w1, k_b1, k_w3, k_b3, k_w5, k_b5,
     k_g, k_be) = jax.random.split(key, 10)

    N, H, W = 2, 16, 16
    out_c = 8
    gamma = 0.5 + jax.random.uniform(k_g, (out_c,), dtype=jnp.float32)
    beta = 0.1 * jax.random.normal(k_be, (out_c,), dtype=jnp.float32)

    # bf16 intermediate storage -> looser tolerance (scale-amplified rounding);
    # the f32-intermediate config below is checked tightly.
    TOL_BF16 = 3e-2
    TOL_F32 = 2e-3

    # Config A: module defaults (1x1 conv, stride 1, no padding).
    in_c = 4
    x = jax.random.normal(k_x, (N, in_c, H, W), dtype=jnp.float32)
    w1 = 0.1 * jax.random.normal(k_w1, (out_c, in_c, 1, 1), dtype=jnp.float32)
    b1 = 0.1 * jax.random.normal(k_b1, (out_c,), dtype=jnp.float32)
    y1 = conv_bn_relu(x, w1, b1, gamma, beta, k=1)
    jax.block_until_ready(y1)
    ref1 = _reference(x, w1, b1, gamma, beta, k=1, s=1, p=0, d=1)
    assert y1.shape == (N, out_c, H, W)
    err1 = float(jnp.max(jnp.abs(y1 - ref1)))
    assert err1 < TOL_BF16, f"config A mismatch: {err1}"

    # Config B: 3x3 conv, padding 1, small M tile -> multi-tile partial stats.
    w3 = 0.1 * jax.random.normal(k_w3, (out_c, in_c, 3, 3), dtype=jnp.float32)
    b3 = 0.1 * jax.random.normal(k_b3, (out_c,), dtype=jnp.float32)
    ref3 = _reference(x, w3, b3, gamma, beta, k=3, s=1, p=1, d=1)
    y3 = conv_bn_relu(x, w3, b3, gamma, beta, k=3, p=1, tm=128)
    jax.block_until_ready(y3)
    assert y3.shape == (N, out_c, H, W)
    err3 = float(jnp.max(jnp.abs(y3 - ref3)))
    assert err3 < TOL_BF16, f"config B mismatch: {err3}"

    # Config C: deeper K with a tiny max_tk -> exercises the multi-K-tile
    # accumulator path with the resident-weight pl.ds slice.
    in_c2 = 16
    x2 = jax.random.normal(k_x2, (N, in_c2, H, W), dtype=jnp.float32)
    w5 = 0.1 * jax.random.normal(k_w5, (out_c, in_c2, 3, 3), dtype=jnp.float32)
    b5 = 0.1 * jax.random.normal(k_b5, (out_c,), dtype=jnp.float32)
    refc = _reference(x2, w5, b5, gamma, beta, k=3, s=1, p=1, d=1)
    yc = conv_bn_relu(x2, w5, b5, gamma, beta, k=3, p=1, tm=256, max_tk=128)
    jax.block_until_ready(yc)
    assert yc.shape == (N, out_c, H, W)
    errc = float(jnp.max(jnp.abs(yc - refc)))
    assert errc < TOL_BF16, f"config C mismatch: {errc}"

    # Config D: same as C but with the weight streamed per K tile (non-resident
    # fallback path).
    yd = conv_bn_relu(x2, w5, b5, gamma, beta, k=3, p=1, tm=256, max_tk=128,
                      w_resident_max_bytes=0)
    jax.block_until_ready(yd)
    errd = float(jnp.max(jnp.abs(yd - refc)))
    assert errd < TOL_BF16, f"config D mismatch: {errd}"

    # Config E: f32 intermediate -> tight check of the conv/BN/ReLU math
    # (also validates that dropping the Conv2d bias is exact).
    ye = conv_bn_relu(x, w3, b3, gamma, beta, k=3, p=1,
                      inter_dtype=jnp.float32)
    jax.block_until_ready(ye)
    erre = float(jnp.max(jnp.abs(ye - ref3)))
    assert erre < TOL_F32, f"config E mismatch: {erre}"

    print("KERNEL_OK")
</pallas_src>

<mosaic_0001>
module attributes {stable_mosaic.version = 11 : i64} {
  func.func @_conv_stats_kernel(%arg0: i32, %arg1: memref<512x128xbf16, #tpu.memory_space<vmem>>, %arg2: memref<128x128xbf16, #tpu.memory_space<vmem>>, %arg3: memref<512x128xbf16, #tpu.memory_space<vmem>>, %arg4: memref<8x128xf32, #tpu.memory_space<vmem>>, %arg5: memref<8x128xf32, #tpu.memory_space<vmem>>) attributes {dimension_semantics = [#tpu.dimension_semantics<parallel>], iteration_bounds = array<i64: 1>, scalar_prefetch = 0 : i64, scratch_operands = 0 : i64, tpu.core_type = #tpu.core_type<tc>, window_params = [{transform_indices = @transform_0, window_bounds = array<i64: 512, 128>}, {pipeline_mode = #tpu.pipeline_mode<synchronous>, transform_indices = @transform_1, window_bounds = array<i64: 128, 128>}, {transform_indices = @transform_2, window_bounds = array<i64: 512, 128>}, {transform_indices = @transform_3, window_bounds = array<i64: 8, 128>}, {transform_indices = @transform_4, window_bounds = array<i64: 8, 128>}]} {
    %c0 = arith.constant 0 : index
    %c0_0 = arith.constant 0 : index
    %0 = vector.load %arg1[%c0, %c0_0] : memref<512x128xbf16, #tpu.memory_space<vmem>>, vector<512x128xbf16>
    %c0_1 = arith.constant 0 : index
    %c0_2 = arith.constant 0 : index
    %1 = vector.load %arg2[%c0_1, %c0_2] : memref<128x128xbf16, #tpu.memory_space<vmem>>, vector<128x128xbf16>
    %cst = arith.constant dense<0.000000e+00> : vector<512x128xf32>
    %2 = tpu.matmul %0, %1, %cst {dimension_numbers = #tpu.dot_dimension_numbers<[1], [0], [0], [1], [0, 0, 1, 1], [], []>} : vector<512x128xbf16>, vector<128x128xbf16>, vector<512x128xf32> -> vector<512x128xf32>
    %3 = arith.truncf %2 : vector<512x128xf32> to vector<512x128xbf16>
    %c0_3 = arith.constant 0 : index
    %c0_4 = arith.constant 0 : index
    %4 = vector.load %arg3[%c0_3, %c0_4] : memref<512x128xbf16, #tpu.memory_space<vmem>>, vector<512x128xbf16>
    tpu.vector_store %arg3[%c0_3, %c0_4], %3 {strides = array<i32>} : memref<512x128xbf16, #tpu.memory_space<vmem>>, vector<512x128xbf16>,
    %5 = tpu.iota {dimensions = array<i32: 0>} : vector<8x128xi32>
    %c0_i32 = arith.constant 0 : i32
    %6 = vector.broadcast %c0_i32 : i32 to vector<8x128xi32>
    %7 = arith.cmpi eq, %5, %6 : vector<8x128xi32>
    %cst_5 = arith.constant dense<0.000000e+00> : vector<128xf32>
    %8 = vector.multi_reduction <add>, %2, %cst_5 [0] : vector<512x128xf32> to vector<128xf32>
    %9 = vector.shape_cast %8 : vector<128xf32> to vector<1x128xf32>
    %cst_6 = arith.constant 0.000000e+00 : f32
    %10 = vector.shape_cast %9 : vector<1x128xf32> to vector<1x128xf32>
    %11 = vector.broadcast %10 : vector<1x128xf32> to vector<8x128xf32>
    %12 = vector.broadcast %cst_6 : f32 to vector<8x128xf32>
    %13 = arith.select %7, %11, %12 : vector<8x128xi1>, vector<8x128xf32>
    %c0_7 = arith.constant 0 : index
    %c0_8 = arith.constant 0 : index
    %14 = vector.load %arg4[%c0_7, %c0_8] : memref<8x128xf32, #tpu.memory_space<vmem>>, vector<8x128xf32>
    tpu.vector_store %arg4[%c0_7, %c0_8], %13 {strides = array<i32>} : memref<8x128xf32, #tpu.memory_space<vmem>>, vector<8x128xf32>,
    %15 = arith.mulf %2, %2 : vector<512x128xf32>
    %cst_9 = arith.constant dense<0.000000e+00> : vector<128xf32>
    %16 = vector.multi_reduction <add>, %15, %cst_9 [0] : vector<512x128xf32> to vector<128xf32>
    %17 = vector.shape_cast %16 : vector<128xf32> to vector<1x128xf32>
    %cst_10 = arith.constant 0.000000e+00 : f32
    %18 = vector.shape_cast %17 : vector<1x128xf32> to vector<1x128xf32>
    %19 = vector.broadcast %18 : vector<1x128xf32> to vector<8x128xf32>
    %20 = vector.broadcast %cst_10 : f32 to vector<8x128xf32>
    %21 = arith.select %7, %19, %20 : vector<8x128xi1>, vector<8x128xf32>
    %c0_11 = arith.constant 0 : index
    %c0_12 = arith.constant 0 : index
    %22 = vector.load %arg5[%c0_11, %c0_12] : memref<8x128xf32, #tpu.memory_space<vmem>>, vector<8x128xf32>
    tpu.vector_store %arg5[%c0_11, %c0_12], %21 {strides = array<i32>} : memref<8x128xf32, #tpu.memory_space<vmem>>, vector<8x128xf32>,
    return
  }
  func.func @transform_0(%arg0: i32) -> (i32, i32) {
    %c0_i32 = arith.constant 0 : i32
    %c0_i32_0 = arith.constant 0 : i32
    return %arg0, %c0_i32 : i32, i32
  }
  func.func @transform_1(%arg0: i32) -> (i32, i32) {
    %c0_i32 = arith.constant 0 : i32
    %c0_i32_0 = arith.constant 0 : i32
    %c0_i32_1 = arith.constant 0 : i32
    return %c0_i32, %c0_i32_0 : i32, i32
  }
  func.func @transform_2(%arg0: i32) -> (i32, i32) {
    %c0_i32 = arith.constant 0 : i32
    %c0_i32_0 = arith.constant 0 : i32
    return %arg0, %c0_i32 : i32, i32
  }
  func.func @transform_3(%arg0: i32) -> (i32, i32) {
    %c0_i32 = arith.constant 0 : i32
    %c0_i32_0 = arith.constant 0 : i32
    return %arg0, %c0_i32 : i32, i32
  }
  func.func @transform_4(%arg0: i32) -> (i32, i32) {
    %c0_i32 = arith.constant 0 : i32
    %c0_i32_0 = arith.constant 0 : i32
    return %arg0, %c0_i32 : i32, i32
  }
}

module attributes {stable_mosaic.version = 11 : i64} {
  func.func @_bn_relu_kernel(%arg0: i32, %arg1: memref<512x128xbf16, #tpu.memory_space<vmem>>, %arg2: memref<1x128xf32, #tpu.memory_space<vmem>>, %arg3: memref<1x128xf32, #tpu.memory_space<vmem>>, %arg4: memref<1x128xf32, #tpu.memory_space<vmem>>, %arg5: memref<1x128xf32, #tpu.memory_space<vmem>>, %arg6: memref<512x128xf32, #tpu.memory_space<vmem>>) attributes {dimension_semantics = [#tpu.dimension_semantics<parallel>], iteration_bounds = array<i64: 1>, scalar_prefetch = 0 : i64, scratch_operands = 0 : i64, tpu.core_type = #tpu.core_type<tc>, window_params = [{transform_indices = @transform_0, window_bounds = array<i64: 512, 128>}, {pipeline_mode = #tpu.pipeline_mode<synchronous>, transform_indices = @transform_1, window_bounds = array<i64: 1, 128>}, {pipeline_mode = #tpu.pipeline_mode<synchronous>, transform_indices = @transform_2, window_bounds = array<i64: 1, 128>}, {pipeline_mode = #tpu.pipeline_mode<synchronous>, transform_indices = @transform_3, window_bounds = array<i64: 1, 128>}, {pipeline_mode = #tpu.pipeline_mode<synchronous>, transform_indices = @transform_4, window_bounds = array<i64: 1, 128>}, {transform_indices = @transform_5, window_bounds = array<i64: 512, 128>}]} {
    %c0 = arith.constant 0 : index
    %c0_0 = arith.constant 0 : index
    %0 = vector.load %arg2[%c0, %c0_0] : memref<1x128xf32, #tpu.memory_space<vmem>>, vector<1x128xf32>
    %cst = arith.constant 0.001953125 : f32
    %1 = vector.broadcast %cst : f32 to vector<1x128xf32>
    %2 = arith.mulf %0, %1 : vector<1x128xf32>
    %c0_1 = arith.constant 0 : index
    %c0_2 = arith.constant 0 : index
    %3 = vector.load %arg3[%c0_1, %c0_2] : memref<1x128xf32, #tpu.memory_space<vmem>>, vector<1x128xf32>
    %cst_3 = arith.constant 0.001953125 : f32
    %4 = vector.broadcast %cst_3 : f32 to vector<1x128xf32>
    %5 = arith.mulf %3, %4 : vector<1x128xf32>
    %6 = arith.mulf %2, %2 : vector<1x128xf32>
    %7 = arith.subf %5, %6 : vector<1x128xf32>
    %cst_4 = arith.constant 0.000000e+00 : f32
    %8 = vector.broadcast %cst_4 : f32 to vector<1x128xf32>
    %9 = arith.maximumf %7, %8 : vector<1x128xf32>
    %c0_5 = arith.constant 0 : index
    %c0_6 = arith.constant 0 : index
    %10 = vector.load %arg4[%c0_5, %c0_6] : memref<1x128xf32, #tpu.memory_space<vmem>>, vector<1x128xf32>
    %cst_7 = arith.constant 9.99999974E-6 : f32
    %11 = vector.broadcast %cst_7 : f32 to vector<1x128xf32>
    %12 = arith.addf %9, %11 : vector<1x128xf32>
    %13 = math.rsqrt %12 : vector<1x128xf32>
    %14 = arith.mulf %10, %13 : vector<1x128xf32>
    %c0_8 = arith.constant 0 : index
    %c0_9 = arith.constant 0 : index
    %15 = vector.load %arg5[%c0_8, %c0_9] : memref<1x128xf32, #tpu.memory_space<vmem>>, vector<1x128xf32>
    %16 = arith.mulf %2, %14 : vector<1x128xf32>
    %17 = arith.subf %15, %16 : vector<1x128xf32>
    %c0_10 = arith.constant 0 : index
    %c0_11 = arith.constant 0 : index
    %18 = vector.load %arg1[%c0_10, %c0_11] : memref<512x128xbf16, #tpu.memory_space<vmem>>, vector<512x128xbf16>
    %19 = arith.extf %18 : vector<512x128xbf16> to vector<512x128xf32>
    %20 = vector.broadcast %14 : vector<1x128xf32> to vector<512x128xf32>
    %21 = arith.mulf %19, %20 : vector<512x128xf32>
    %22 = vector.broadcast %17 : vector<1x128xf32> to vector<512x128xf32>
    %23 = arith.addf %21, %22 : vector<512x128xf32>
    %cst_12 = arith.constant 0.000000e+00 : f32
    %24 = vector.broadcast %cst_12 : f32 to vector<512x128xf32>
    %25 = arith.maximumf %23, %24 : vector<512x128xf32>
    %c0_13 = arith.constant 0 : index
    %c0_14 = arith.constant 0 : index
    %26 = vector.load %arg6[%c0_13, %c0_14] : memref<512x128xf32, #tpu.memory_space<vmem>>, vector<512x128xf32>
    tpu.vector_store %arg6[%c0_13, %c0_14], %25 {strides = array<i32>} : memref<512x128xf32, #tpu.memory_space<vmem>>, vector<512x128xf32>,
    return
  }
  func.func @transform_0(%arg0: i32) -> (i32, i32) {
    %c0_i32 = arith.constant 0 : i32
    %c0_i32_0 = arith.constant 0 : i32
    return %arg0, %c0_i32 : i32, i32
  }
  func.func @transform_1(%arg0: i32) -> (i32, i32) {
    %c0_i32 = arith.constant 0 : i32
    %c0_i32_0 = arith.constant 0 : i32
    %c0_i32_1 = arith.constant 0 : i32
    return %c0_i32, %c0_i32_0 : i32, i32
  }
  func.func @transform_2(%arg0: i32) -> (i32, i32) {
    %c0_i32 = arith.constant 0 : i32
    %c0_i32_0 = arith.constant 0 : i32
    %c0_i32_1 = arith.constant 0 : i32
    return %c0_i32, %c0_i32_0 : i32, i32
  }
  func.func @transform_3(%arg0: i32) -> (i32, i32) {
    %c0_i32 = arith.constant 0 : i32
    %c0_i32_0 = arith.constant 0 : i32
    %c0_i32_1 = arith.constant 0 : i32
    return %c0_i32, %c0_i32_0 : i32, i32
  }
  func.func @transform_4(%arg0: i32) -> (i32, i32) {
    %c0_i32 = arith.constant 0 : i32
    %c0_i32_0 = arith.constant 0 : i32
    %c0_i32_1 = arith.constant 0 : i32
    return %c0_i32, %c0_i32_0 : i32, i32
  }
  func.func @transform_5(%arg0: i32) -> (i32, i32) {
    %c0_i32 = arith.constant 0 : i32
    %c0_i32_0 = arith.constant 0 : i32
    return %arg0, %c0_i32 : i32, i32
  }
}

</mosaic_0001>

<llo_original>
// kernel: conv_bn_relu.3
$region0: #{conv_bn_relu.3}
  #allocation0 [shape = 'u32[]', space=smem, size = 0x4, offset = 0x4, fixed_abs, tag = 'smem constant byte address 0x4 - core index']
  #allocation1 [shape = 'u32[144,128]{1,0:T(1,128)}', space=vmem, size = 0x12000, scoped, tag = 'internal scratch']
  %s0 = inlined_call_operand.hbm [shape: bf16[512,128], index: 0, kind: input, shape index: {}]
  %s1 = inlined_call_operand.hbm [shape: f32[1,128], index: 1, kind: input, shape index: {}]
  %s2 = inlined_call_operand.hbm [shape: f32[1,128], index: 2, kind: input, shape index: {}]
  %s3 = inlined_call_operand.hbm [shape: f32[1,128], index: 3, kind: input, shape index: {}]
  %s4 = inlined_call_operand.hbm [shape: f32[1,128], index: 4, kind: input, shape index: {}]
  %s5 = inlined_call_operand.hbm [shape: f32[512,128], index: 5, kind: output, shape index: {}]
  %s6 = sld [smem:[#allocation0]]
  $region50: #{conv_bn_relu.3} parent=0
    _
  %s8 = ssub.s32 1, %s6
  %s9 = scalar_select 0, %s8, %s6
  $region1: #{conv_bn_relu.3} parent=0
    #allocation2 [shape = 'u8[131072]{0}', space=vmem, size = 0x20000, scoped, tag = 'input window, operand 0, single buffered']
    #allocation3 [shape = 's32[1]{0}', space=sflag, size = 0x4, scoped, tag = 'scoped memory for conv_bn_relu.3']
    #allocation4 [shape = 's32[1]{0}', space=sflag, size = 0x4, scoped, tag = 'scoped memory for conv_bn_relu.3']
    #allocation5 [shape = 'u8[512]{0}', space=vmem, size = 0x400, scoped, tag = 'input window, operand 1, single buffered']
    #allocation6 [shape = 's32[1]{0}', space=sflag, size = 0x4, scoped, tag = 'scoped memory for conv_bn_relu.3']
    #allocation7 [shape = 'u8[512]{0}', space=vmem, size = 0x400, scoped, tag = 'input window, operand 2, single buffered']
    #allocation8 [shape = 'u8[512]{0}', space=vmem, size = 0x400, scoped, tag = 'input window, operand 3, single buffered']
    #allocation9 [shape = 's32[1]{0}', space=sflag, size = 0x4, scoped, tag = 'scoped memory for conv_bn_relu.3']
    #allocation10 [shape = 'u8[512]{0}', space=vmem, size = 0x400, scoped, tag = 'input window, operand 4, single buffered']
    #allocation11 [shape = 'u8[262144]{0}', space=vmem, size = 0x40000, scoped, tag = 'output window, operand 0, single buffered']
    %10 = vsyncpa [#allocation3], 0
    %11 = vsyncpa [#allocation6], 0
    %12 = vsyncpa [#allocation9], 0
    %13 = vsyncpa [#allocation4], 0
    // Predicated region
    $region2: #{conv_bn_relu.3} parent=1 // pred_check
      _
    $region3: #{conv_bn_relu.3} parent=1 // pred_check_branch
      %15 = sbr.rel (0) target = $region5
    $region4: #{conv_bn_relu.3} parent=1 // pred_region
      %s17 = ssub.s32 4096, 4096
      %18 = vsyncadd [#allocation3], %s17
      %s19 = sshll.u32 [#allocation2], 4
      %s20 = int_to_ptr.vmem [resolvable:$true] %s19
      %25 = dma.hbm_to_vmem [thread:$0]  %s0, 4096, %s20, [#allocation3], 64, 64, 4
    $region5: #{conv_bn_relu.3} parent=1 // pred_fallthru
      _
    // Predicated region
    $region6: #{conv_bn_relu.3} parent=1 // pred_check
      _
    $region7: #{conv_bn_relu.3} parent=1 // pred_check_branch
      %27 = sbr.rel (0) target = $region9
    $region8: #{conv_bn_relu.3} parent=1 // pred_region
      %s29 = ssub.s32 16, 16
      %30 = vsyncadd [#allocation6], %s29
      %s32 = sshll.u32 [#allocation5], 4
      %s33 = int_to_ptr.vmem [resolvable:$true] %s32
      %35 = dma.hbm_to_vmem [thread:$0]  %s1, 16, %s33, [#allocation6]
    $region9: #{conv_bn_relu.3} parent=1 // pred_fallthru
      _
    // Predicated region
    $region10: #{conv_bn_relu.3} parent=1 // pred_check
      _
    $region11: #{conv_bn_relu.3} parent=1 // pred_check_branch
      %37 = sbr.rel (0) target = $region13
    $region12: #{conv_bn_relu.3} parent=1 // pred_region
      %s39 = ssub.s32 16, 16
      %40 = vsyncadd [#allocation6], %s39
      %s42 = sshll.u32 [#allocation7], 4
      %s43 = int_to_ptr.vmem [resolvable:$true] %s42
      %45 = dma.hbm_to_vmem [thread:$0]  %s2, 16, %s43, [#allocation6]
    $region13: #{conv_bn_relu.3} parent=1 // pred_fallthru
      _
    // Predicated region
    $region14: #{conv_bn_relu.3} parent=1 // pred_check
      _
    $region15: #{conv_bn_relu.3} parent=1 // pred_check_branch
      %47 = sbr.rel (0) target = $region17
    $region16: #{conv_bn_relu.3} parent=1 // pred_region
      %s49 = ssub.s32 16, 16
      %50 = vsyncadd [#allocation9], %s49
      %s52 = sshll.u32 [#allocation8], 4
      %s53 = int_to_ptr.vmem [resolvable:$true] %s52
      %55 = dma.hbm_to_vmem [thread:$0]  %s3, 16, %s53, [#allocation9]
    $region17: #{conv_bn_relu.3} parent=1 // pred_fallthru
      _
    // Predicated region
    $region18: #{conv_bn_relu.3} parent=1 // pred_check
      _
    $region19: #{conv_bn_relu.3} parent=1 // pred_check_branch
      %57 = sbr.rel (0) target = $region21
    $region20: #{conv_bn_relu.3} parent=1 // pred_region
      %s59 = ssub.s32 16, 16
      %60 = vsyncadd [#allocation9], %s59
      %s62 = sshll.u32 [#allocation10], 4
      %s63 = int_to_ptr.vmem [resolvable:$true] %s62
      %65 = dma.hbm_to_vmem [thread:$0]  %s4, 16, %s63, [#allocation9]
    $region21: #{conv_bn_relu.3} parent=1 // pred_fallthru
      _
    // Predicated region
    $region22: #{conv_bn_relu.3} parent=1 // pred_check
      _
    $region23: #{conv_bn_relu.3} parent=1 // pred_check_branch
      %67 = sbr.rel (0) target = $region25
    $region24: #{conv_bn_relu.3} parent=1 // pred_region
      %68 = dma.done [#allocation3], 4096
    $region25: #{conv_bn_relu.3} parent=1 // pred_fallthru
      _
    // Predicated region
    $region26: #{conv_bn_relu.3} parent=1 // pred_check
      _
    $region27: #{conv_bn_relu.3} parent=1 // pred_check_branch
      %70 = sbr.rel (0) target = $region29
    $region28: #{conv_bn_relu.3} parent=1 // pred_region
      %71 = dma.done [#allocation6], 16
    $region29: #{conv_bn_relu.3} parent=1 // pred_fallthru
      _
    // Predicated region
    $region30: #{conv_bn_relu.3} parent=1 // pred_check
      _
    $region31: #{conv_bn_relu.3} parent=1 // pred_check_branch
      %73 = sbr.rel (0) target = $region33
    $region32: #{conv_bn_relu.3} parent=1 // pred_region
      %74 = dma.done [#allocation6], 16
    $region33: #{conv_bn_relu.3} parent=1 // pred_fallthru
      _
    // Predicated region
    $region34: #{conv_bn_relu.3} parent=1 // pred_check
      _
    $region35: #{conv_bn_relu.3} parent=1 // pred_check_branch
      %76 = sbr.rel (0) target = $region37
    $region36: #{conv_bn_relu.3} parent=1 // pred_region
      %77 = dma.done [#allocation9], 16
    $region37: #{conv_bn_relu.3} parent=1 // pred_fallthru
      _
    // Predicated region
    $region38: #{conv_bn_relu.3} parent=1 // pred_check
      _
    $region39: #{conv_bn_relu.3} parent=1 // pred_check_branch
      %79 = sbr.rel (0) target = $region41
    $region40: #{conv_bn_relu.3} parent=1 // pred_region
      %80 = dma.done [#allocation9], 16
    $region41: #{conv_bn_relu.3} parent=1 // pred_fallthru
      _
    %v81 = vld [vmem:[#allocation5] sm:$0x1]
    %v82 = vmul.f32 %v81, 0.001953125
    %v83 = vld [vmem:[#allocation7] sm:$0x1]
    %v84 = vmul.f32 %v83, 0.001953125
    %v85 = vmul.f32 %v82, %v82
    %v86 = vsub.f32 %v84, %v85
    %v87 = vmax.f32 %v86, 0.0
    %v88 = vld [vmem:[#allocation8] sm:$0x1]
    %v89 = vadd.f32 %v87, 1e-05
    %v90 = vrsqrt.pop %v89
    %v91 = vmul.f32 %v88, %v90
    %v92 = vld [vmem:[#allocation10] sm:$0x1]
    %v93 = vmul.f32 %v82, %v91
    %v94 = vsub.f32 %v92, %v93
    %v95 = vld [vmem:[#allocation2] sm:$0xf]
    %v96 = vld [vmem:[#allocation2 + $0x4] sm:$0xf]
    %v97 = vld [vmem:[#allocation2 + $0x8] sm:$0xf]
    %v98 = vld [vmem:[#allocation2 + $0xc] sm:$0xf]
    %v99 = vld [vmem:[#allocation2 + $0x10] sm:$0xf]
    %v100 = vld [vmem:[#allocation2 + $0x14] sm:$0xf]
    %v101 = vld [vmem:[#allocation2 + $0x18] sm:$0xf]
    %v102 = vld [vmem:[#allocation2 + $0x1c] sm:$0xf]
    %v103 = vld [vmem:[#allocation2 + $0x20] sm:$0xf]
    %v104 = vld [vmem:[#allocation2 + $0x24] sm:$0xf]
    %v105 = vld [vmem:[#allocation2 + $0x28] sm:$0xf]
    %v106 = vld [vmem:[#allocation2 + $0x2c] sm:$0xf]
    %v107 = vld [vmem:[#allocation2 + $0x30] sm:$0xf]
    %v108 = vld [vmem:[#allocation2 + $0x34] sm:$0xf]
    %v109 = vld [vmem:[#allocation2 + $0x38] sm:$0xf]
    %v110 = vld [vmem:[#allocation2 + $0x3c] sm:$0xf]
    %v111 = vld [vmem:[#allocation2 + $0x40] sm:$0xf]
    %v112 = vld [vmem:[#allocation2 + $0x44] sm:$0xf]
    %v113 = vld [vmem:[#allocation2 + $0x48] sm:$0xf]
    %v114 = vld [vmem:[#allocation2 + $0x4c] sm:$0xf]
    %v115 = vld [vmem:[#allocation2 + $0x50] sm:$0xf]
    %v116 = vld [vmem:[#allocation2 + $0x54] sm:$0xf]
    %v117 = vld [vmem:[#allocation2 + $0x58] sm:$0xf]
    %v118 = vld [vmem:[#allocation2 + $0x5c] sm:$0xf]
    %v119 = vld [vmem:[#allocation2 + $0x60] sm:$0xf]
    %v120 = vld [vmem:[#allocation2 + $0x64] sm:$0xf]
    %v121 = vld [vmem:[#allocation2 + $0x68] sm:$0xf]
    %v122 = vld [vmem:[#allocation2 + $0x6c] sm:$0xf]
    %v123 = vld [vmem:[#allocation2 + $0x70] sm:$0xf]
    %v124 = vld [vmem:[#allocation2 + $0x74] sm:$0xf]
    %v125 = vld [vmem:[#allocation2 + $0x78] sm:$0xf]
    %v126 = vld [vmem:[#allocation2 + $0x7c] sm:$0xf]
    %v127 = vld [vmem:[#allocation2 + $0x80] sm:$0xf]
    %v128 = vld [vmem:[#allocation2 + $0x84] sm:$0xf]
    %v129 = vld [vmem:[#allocation2 + $0x88] sm:$0xf]
    %v130 = vld [vmem:[#allocation2 + $0x8c] sm:$0xf]
    %v131 = vld [vmem:[#allocation2 + $0x90] sm:$0xf]
    %v132 = vld [vmem:[#allocation2 + $0x94] sm:$0xf]
    %v133 = vld [vmem:[#allocation2 + $0x98] sm:$0xf]
    %v134 = vld [vmem:[#allocation2 + $0x9c] sm:$0xf]
    %v135 = vld [vmem:[#allocation2 + $0xa0] sm:$0xf]
    %v136 = vld [vmem:[#allocation2 + $0xa4] sm:$0xf]
    %v137 = vld [vmem:[#allocation2 + $0xa8] sm:$0xf]
    %v138 = vld [vmem:[#allocation2 + $0xac] sm:$0xf]
    %v139 = vld [vmem:[#allocation2 + $0xb0] sm:$0xf]
    %v140 = vld [vmem:[#allocation2 + $0xb4] sm:$0xf]
    %v141 = vld [vmem:[#allocation2 + $0xb8] sm:$0xf]
    %v142 = vld [vmem:[#allocation2 + $0xbc] sm:$0xf]
    %v143 = vld [vmem:[#allocation2 + $0xc0] sm:$0xf]
    %v144 = vld [vmem:[#allocation2 + $0xc4] sm:$0xf]
    %v145 = vld [vmem:[#allocation2 + $0xc8] sm:$0xf]
    %v146 = vld [vmem:[#allocation2 + $0xcc] sm:$0xf]
    %v147 = vld [vmem:[#allocation2 + $0xd0] sm:$0xf]
    %v148 = vld [vmem:[#allocation2 + $0xd4] sm:$0xf]
    %v149 = vld [vmem:[#allocation2 + $0xd8] sm:$0xf]
    %v150 = vld [vmem:[#allocation2 + $0xdc] sm:$0xf]
    %v151 = vld [vmem:[#allocation2 + $0xe0] sm:$0xf]
    %v152 = vld [vmem:[#allocation2 + $0xe4] sm:$0xf]
    %v153 = vld [vmem:[#allocation2 + $0xe8] sm:$0xf]
    %v154 = vld [vmem:[#allocation2 + $0xec] sm:$0xf]
    %v155 = vld [vmem:[#allocation2 + $0xf0] sm:$0xf]
    %v156 = vld [vmem:[#allocation2 + $0xf4] sm:$0xf]
    %v157 = vld [vmem:[#allocation2 + $0xf8] sm:$0xf]
    %v158 = vld [vmem:[#allocation2 + $0xfc] sm:$0xf]
    %v159 = vunpack.c.l.bf16 %v95
    %v160 = vunpack.c.l.bf16 %v96
    %v161 = vunpack.c.l.bf16 %v97
    %v162 = vunpack.c.l.bf16 %v98
    %v163 = vunpack.c.l.bf16 %v99
    %v164 = vunpack.c.l.bf16 %v100
    %v165 = vunpack.c.l.bf16 %v101
    %v166 = vunpack.c.l.bf16 %v102
    %v167 = vunpack.c.l.bf16 %v103
    %v168 = vunpack.c.l.bf16 %v104
    %v169 = vunpack.c.l.bf16 %v105
    %v170 = vunpack.c.l.bf16 %v106
    %v171 = vunpack.c.l.bf16 %v107
    %v172 = vunpack.c.l.bf16 %v108
    %v173 = vunpack.c.l.bf16 %v109
    %v174 = vunpack.c.l.bf16 %v110
    %v175 = vunpack.c.l.bf16 %v111
    %v176 = vunpack.c.l.bf16 %v112
    %v177 = vunpack.c.l.bf16 %v113
    %v178 = vunpack.c.l.bf16 %v114
    %v179 = vunpack.c.l.bf16 %v115
    %v180 = vunpack.c.l.bf16 %v116
    %v181 = vunpack.c.l.bf16 %v117
    %v182 = vunpack.c.l.bf16 %v118
    %v183 = vunpack.c.l.bf16 %v119
    %v184 = vunpack.c.l.bf16 %v120
    %v185 = vunpack.c.l.bf16 %v121
    %v186 = vunpack.c.l.bf16 %v122
    %v187 = vunpack.c.l.bf16 %v123
    %v188 = vunpack.c.l.bf16 %v124
    %v189 = vunpack.c.l.bf16 %v125
    %v190 = vunpack.c.l.bf16 %v126
    %v191 = vunpack.c.l.bf16 %v127
    %v192 = vunpack.c.l.bf16 %v128
    %v193 = vunpack.c.l.bf16 %v129
    %v194 = vunpack.c.l.bf16 %v130
    %v195 = vunpack.c.l.bf16 %v131
    %v196 = vunpack.c.l.bf16 %v132
    %v197 = vunpack.c.l.bf16 %v133
    %v198 = vunpack.c.l.bf16 %v134
    %v199 = vunpack.c.l.bf16 %v135
    %v200 = vunpack.c.l.bf16 %v136
    %v201 = vunpack.c.l.bf16 %v137
    %v202 = vunpack.c.l.bf16 %v138
    %v203 = vunpack.c.l.bf16 %v139
    %v204 = vunpack.c.l.bf16 %v140
    %v205 = vunpack.c.l.bf16 %v141
    %v206 = vunpack.c.l.bf16 %v142
    %v207 = vunpack.c.l.bf16 %v143
    %v208 = vunpack.c.l.bf16 %v144
    %v209 = vunpack.c.l.bf16 %v145
    %v210 = vunpack.c.l.bf16 %v146
    %v211 = vunpack.c.l.bf16 %v147
    %v212 = vunpack.c.l.bf16 %v148
    %v213 = vunpack.c.l.bf16 %v149
    %v214 = vunpack.c.l.bf16 %v150
    %v215 = vunpack.c.l.bf16 %v151
    %v216 = vunpack.c.l.bf16 %v152
    %v217 = vunpack.c.l.bf16 %v153
    %v218 = vunpack.c.l.bf16 %v154
    %v219 = vunpack.c.l.bf16 %v155
    %v220 = vunpack.c.l.bf16 %v156
    %v221 = vunpack.c.l.bf16 %v157
    %v222 = vunpack.c.l.bf16 %v158
    %v224 = vlaneseq
    %v225 = vshrl.u32 %v224, 7
    %v226 = vsub.s32 0, %v225
    %v227 = vrot.slane %v91, %v226
    %v229 = vmul.f32 %v159, %v227
    %v230 = vmul.f32 %v160, %v227
    %v231 = vmul.f32 %v161, %v227
    %v232 = vmul.f32 %v162, %v227
    %v233 = vmul.f32 %v163, %v227
    %v234 = vmul.f32 %v164, %v227
    %v235 = vmul.f32 %v165, %v227
    %v236 = vmul.f32 %v166, %v227
    %v237 = vmul.f32 %v167, %v227
    %v238 = vmul.f32 %v168, %v227
    %v239 = vmul.f32 %v169, %v227
    %v240 = vmul.f32 %v170, %v227
    %v241 = vmul.f32 %v171, %v227
    %v242 = vmul.f32 %v172, %v227
    %v243 = vmul.f32 %v173, %v227
    %v244 = vmul.f32 %v174, %v227
    %v245 = vmul.f32 %v175, %v227
    %v246 = vmul.f32 %v176, %v227
    %v247 = vmul.f32 %v177, %v227
    %v248 = vmul.f32 %v178, %v227
    %v249 = vmul.f32 %v179, %v227
    %v250 = vmul.f32 %v180, %v227
    %v251 = vmul.f32 %v181, %v227
    %v252 = vmul.f32 %v182, %v227
    %v253 = vmul.f32 %v183, %v227
    %v254 = vmul.f32 %v184, %v227
    %v255 = vmul.f32 %v185, %v227
    %v256 = vmul.f32 %v186, %v227
    %v257 = vmul.f32 %v187, %v227
    %v258 = vmul.f32 %v188, %v227
    %v259 = vmul.f32 %v189, %v227
    %v260 = vmul.f32 %v190, %v227
    %v261 = vmul.f32 %v191, %v227
    %v262 = vmul.f32 %v192, %v227
    %v263 = vmul.f32 %v193, %v227
    %v264 = vmul.f32 %v194, %v227
    %v265 = vmul.f32 %v195, %v227
    %v266 = vmul.f32 %v196, %v227
    %v267 = vmul.f32 %v197, %v227
    %v268 = vmul.f32 %v198, %v227
    %v269 = vmul.f32 %v199, %v227
    %v270 = vmul.f32 %v200, %v227
    %v271 = vmul.f32 %v201, %v227
    %v272 = vmul.f32 %v202, %v227
    %v273 = vmul.f32 %v203, %v227
    %v274 = vmul.f32 %v204, %v227
    %v275 = vmul.f32 %v205, %v227
    %v276 = vmul.f32 %v206, %v227
    %v277 = vmul.f32 %v207, %v227
    %v278 = vmul.f32 %v208, %v227
    %v279 = vmul.f32 %v209, %v227
    %v280 = vmul.f32 %v210, %v227
    %v281 = vmul.f32 %v211, %v227
    %v282 = vmul.f32 %v212, %v227
    %v283 = vmul.f32 %v213, %v227
    %v284 = vmul.f32 %v214, %v227
    %v285 = vmul.f32 %v215, %v227
    %v286 = vmul.f32 %v216, %v227
    %v287 = vmul.f32 %v217, %v227
    %v288 = vmul.f32 %v218, %v227
    %v289 = vmul.f32 %v219, %v227
    %v290 = vmul.f32 %v220, %v227
    %v291 = vmul.f32 %v221, %v227
    %v292 = vmul.f32 %v222, %v227
    %v294 = vlaneseq
    %v295 = vshrl.u32 %v294, 7
    %v296 = vsub.s32 0, %v295
    %v297 = vrot.slane %v94, %v296
    %v299 = vadd.f32 %v229, %v297
    %v300 = vadd.f32 %v230, %v297
    %v301 = vadd.f32 %v231, %v297
    %v302 = vadd.f32 %v232, %v297
    %v303 = vadd.f32 %v233, %v297
    %v304 = vadd.f32 %v234, %v297
    %v305 = vadd.f32 %v235, %v297
    %v306 = vadd.f32 %v236, %v297
    %v307 = vadd.f32 %v237, %v297
    %v308 = vadd.f32 %v238, %v297
    %v309 = vadd.f32 %v239, %v297
    %v310 = vadd.f32 %v240, %v297
    %v311 = vadd.f32 %v241, %v297
    %v312 = vadd.f32 %v242, %v297
    %v313 = vadd.f32 %v243, %v297
    %v314 = vadd.f32 %v244, %v297
    %v315 = vadd.f32 %v245, %v297
    %v316 = vadd.f32 %v246, %v297
    %v317 = vadd.f32 %v247, %v297
    %v318 = vadd.f32 %v248, %v297
    %v319 = vadd.f32 %v249, %v297
    %v320 = vadd.f32 %v250, %v297
    %v321 = vadd.f32 %v251, %v297
    %v322 = vadd.f32 %v252, %v297
    %v323 = vadd.f32 %v253, %v297
    %v324 = vadd.f32 %v254, %v297
    %v325 = vadd.f32 %v255, %v297
    %v326 = vadd.f32 %v256, %v297
    %v327 = vadd.f32 %v257, %v297
    %v328 = vadd.f32 %v258, %v297
    %v329 = vadd.f32 %v259, %v297
    %v330 = vadd.f32 %v260, %v297
    %v331 = vadd.f32 %v261, %v297
    %v332 = vadd.f32 %v262, %v297
    %v333 = vadd.f32 %v263, %v297
    %v334 = vadd.f32 %v264, %v297
    %v335 = vadd.f32 %v265, %v297
    %v336 = vadd.f32 %v266, %v297
    %v337 = vadd.f32 %v267, %v297
    %v338 = vadd.f32 %v268, %v297
    %v339 = vadd.f32 %v269, %v297
    %v340 = vadd.f32 %v270, %v297
    %v341 = vadd.f32 %v271, %v297
    %v342 = vadd.f32 %v272, %v297
    %v343 = vadd.f32 %v273, %v297
    %v344 = vadd.f32 %v274, %v297
    %v345 = vadd.f32 %v275, %v297
    %v346 = vadd.f32 %v276, %v297
    %v347 = vadd.f32 %v277, %v297
    %v348 = vadd.f32 %v278, %v297
    %v349 = vadd.f32 %v279, %v297
    %v350 = vadd.f32 %v280, %v297
    %v351 = vadd.f32 %v281, %v297
    %v352 = vadd.f32 %v282, %v297
    %v353 = vadd.f32 %v283, %v297
    %v354 = vadd.f32 %v284, %v297
    %v355 = vadd.f32 %v285, %v297
    %v356 = vadd.f32 %v286, %v297
    %v357 = vadd.f32 %v287, %v297
    %v358 = vadd.f32 %v288, %v297
    %v359 = vadd.f32 %v289, %v297
    %v360 = vadd.f32 %v290, %v297
    %v361 = vadd.f32 %v291, %v297
    %v362 = vadd.f32 %v292, %v297
    %v363 = vmax.f32 %v299, 0.0
    %v364 = vmax.f32 %v300, 0.0
    %v365 = vmax.f32 %v301, 0.0
    %v366 = vmax.f32 %v302, 0.0
    %v367 = vmax.f32 %v303, 0.0
    %v368 = vmax.f32 %v304, 0.0
    %v369 = vmax.f32 %v305, 0.0
    %v370 = vmax.f32 %v306, 0.0
    %v371 = vmax.f32 %v307, 0.0
    %v372 = vmax.f32 %v308, 0.0
    %v373 = vmax.f32 %v309, 0.0
    %v374 = vmax.f32 %v310, 0.0
    %v375 = vmax.f32 %v311, 0.0
    %v376 = vmax.f32 %v312, 0.0
    %v377 = vmax.f32 %v313, 0.0
    %v378 = vmax.f32 %v314, 0.0
    %v379 = vmax.f32 %v315, 0.0
    %v380 = vmax.f32 %v316, 0.0
    %v381 = vmax.f32 %v317, 0.0
    %v382 = vmax.f32 %v318, 0.0
    %v383 = vmax.f32 %v319, 0.0
    %v384 = vmax.f32 %v320, 0.0
    %v385 = vmax.f32 %v321, 0.0
    %v386 = vmax.f32 %v322, 0.0
    %v387 = vmax.f32 %v323, 0.0
    %v388 = vmax.f32 %v324, 0.0
    %v389 = vmax.f32 %v325, 0.0
    %v390 = vmax.f32 %v326, 0.0
    %v391 = vmax.f32 %v327, 0.0
    %v392 = vmax.f32 %v328, 0.0
    %v393 = vmax.f32 %v329, 0.0
    %v394 = vmax.f32 %v330, 0.0
    %v395 = vmax.f32 %v331, 0.0
    %v396 = vmax.f32 %v332, 0.0
    %v397 = vmax.f32 %v333, 0.0
    %v398 = vmax.f32 %v334, 0.0
    %v399 = vmax.f32 %v335, 0.0
    %v400 = vmax.f32 %v336, 0.0
    %v401 = vmax.f32 %v337, 0.0
    %v402 = vmax.f32 %v338, 0.0
    %v403 = vmax.f32 %v339, 0.0
    %v404 = vmax.f32 %v340, 0.0
    %v405 = vmax.f32 %v341, 0.0
    %v406 = vmax.f32 %v342, 0.0
    %v407 = vmax.f32 %v343, 0.0
    %v408 = vmax.f32 %v344, 0.0
    %v409 = vmax.f32 %v345, 0.0
    %v410 = vmax.f32 %v346, 0.0
    %v411 = vmax.f32 %v347, 0.0
    %v412 = vmax.f32 %v348, 0.0
    %v413 = vmax.f32 %v349, 0.0
    %v414 = vmax.f32 %v350, 0.0
    %v415 = vmax.f32 %v351, 0.0
    %v416 = vmax.f32 %v352, 0.0
    %v417 = vmax.f32 %v353, 0.0
    %v418 = vmax.f32 %v354, 0.0
    %v419 = vmax.f32 %v355, 0.0
    %v420 = vmax.f32 %v356, 0.0
    %v421 = vmax.f32 %v357, 0.0
    %v422 = vmax.f32 %v358, 0.0
    %v423 = vmax.f32 %v359, 0.0
    %v424 = vmax.f32 %v360, 0.0
    %v425 = vmax.f32 %v361, 0.0
    %v426 = vmax.f32 %v362, 0.0
    %427 = vst [vmem:[#allocation11] sm:$0xff] %v363
    %428 = vst [vmem:[#allocation11 + $0x8] sm:$0xff] %v364
    %429 = vst [vmem:[#allocation11 + $0x10] sm:$0xff] %v365
    %430 = vst [vmem:[#allocation11 + $0x18] sm:$0xff] %v366
    %431 = vst [vmem:[#allocation11 + $0x20] sm:$0xff] %v367
    %432 = vst [vmem:[#allocation11 + $0x28] sm:$0xff] %v368
    %433 = vst [vmem:[#allocation11 + $0x30] sm:$0xff] %v369
    %434 = vst [vmem:[#allocation11 + $0x38] sm:$0xff] %v370
    %435 = vst [vmem:[#allocation11 + $0x40] sm:$0xff] %v371
    %436 = vst [vmem:[#allocation11 + $0x48] sm:$0xff] %v372
    %437 = vst [vmem:[#allocation11 + $0x50] sm:$0xff] %v373
    %438 = vst [vmem:[#allocation11 + $0x58] sm:$0xff] %v374
    %439 = vst [vmem:[#allocation11 + $0x60] sm:$0xff] %v375
    %440 = vst [vmem:[#allocation11 + $0x68] sm:$0xff] %v376
    %441 = vst [vmem:[#allocation11 + $0x70] sm:$0xff] %v377
    %442 = vst [vmem:[#allocation11 + $0x78] sm:$0xff] %v378
    %443 = vst [vmem:[#allocation11 + $0x80] sm:$0xff] %v379
    %444 = vst [vmem:[#allocation11 + $0x88] sm:$0xff] %v380
    %445 = vst [vmem:[#allocation11 + $0x90] sm:$0xff] %v381
    %446 = vst [vmem:[#allocation11 + $0x98] sm:$0xff] %v382
    %447 = vst [vmem:[#allocation11 + $0xa0] sm:$0xff] %v383
    %448 = vst [vmem:[#allocation11 + $0xa8] sm:$0xff] %v384
    %449 = vst [vmem:[#allocation11 + $0xb0] sm:$0xff] %v385
    %450 = vst [vmem:[#allocation11 + $0xb8] sm:$0xff] %v386
    %451 = vst [vmem:[#allocation11 + $0xc0] sm:$0xff] %v387
    %452 = vst [vmem:[#allocation11 + $0xc8] sm:$0xff] %v388
    %453 = vst [vmem:[#allocation11 + $0xd0] sm:$0xff] %v389
    %454 = vst [vmem:[#allocation11 + $0xd8] sm:$0xff] %v390
    %455 = vst [vmem:[#allocation11 + $0xe0] sm:$0xff] %v391
    %456 = vst [vmem:[#allocation11 + $0xe8] sm:$0xff] %v392
    %457 = vst [vmem:[#allocation11 + $0xf0] sm:$0xff] %v393
    %458 = vst [vmem:[#allocation11 + $0xf8] sm:$0xff] %v394
    %459 = vst [vmem:[#allocation11 + $0x100] sm:$0xff] %v395
    %460 = vst [vmem:[#allocation11 + $0x108] sm:$0xff] %v396
    %461 = vst [vmem:[#allocation11 + $0x110] sm:$0xff] %v397
    %462 = vst [vmem:[#allocation11 + $0x118] sm:$0xff] %v398
    %463 = vst [vmem:[#allocation11 + $0x120] sm:$0xff] %v399
    %464 = vst [vmem:[#allocation11 + $0x128] sm:$0xff] %v400
    %465 = vst [vmem:[#allocation11 + $0x130] sm:$0xff] %v401
    %466 = vst [vmem:[#allocation11 + $0x138] sm:$0xff] %v402
    %467 = vst [vmem:[#allocation11 + $0x140] sm:$0xff] %v403
    %468 = vst [vmem:[#allocation11 + $0x148] sm:$0xff] %v404
    %469 = vst [vmem:[#allocation11 + $0x150] sm:$0xff] %v405
    %470 = vst [vmem:[#allocation11 + $0x158] sm:$0xff] %v406
    %471 = vst [vmem:[#allocation11 + $0x160] sm:$0xff] %v407
    %472 = vst [vmem:[#allocation11 + $0x168] sm:$0xff] %v408
    %473 = vst [vmem:[#allocation11 + $0x170] sm:$0xff] %v409
    %474 = vst [vmem:[#allocation11 + $0x178] sm:$0xff] %v410
    %475 = vst [vmem:[#allocation11 + $0x180] sm:$0xff] %v411
    %476 = vst [vmem:[#allocation11 + $0x188] sm:$0xff] %v412
    %477 = vst [vmem:[#allocation11 + $0x190] sm:$0xff] %v413
    %478 = vst [vmem:[#allocation11 + $0x198] sm:$0xff] %v414
    %479 = vst [vmem:[#allocation11 + $0x1a0] sm:$0xff] %v415
    %480 = vst [vmem:[#allocation11 + $0x1a8] sm:$0xff] %v416
    %481 = vst [vmem:[#allocation11 + $0x1b0] sm:$0xff] %v417
    %482 = vst [vmem:[#allocation11 + $0x1b8] sm:$0xff] %v418
    %483 = vst [vmem:[#allocation11 + $0x1c0] sm:$0xff] %v419
    %484 = vst [vmem:[#allocation11 + $0x1c8] sm:$0xff] %v420
    %485 = vst [vmem:[#allocation11 + $0x1d0] sm:$0xff] %v421
    %486 = vst [vmem:[#allocation11 + $0x1d8] sm:$0xff] %v422
    %487 = vst [vmem:[#allocation11 + $0x1e0] sm:$0xff] %v423
    %488 = vst [vmem:[#allocation11 + $0x1e8] sm:$0xff] %v424
    %489 = vst [vmem:[#allocation11 + $0x1f0] sm:$0xff] %v425
    %490 = vst [vmem:[#allocation11 + $0x1f8] sm:$0xff] %v426
    // Predicated region
    $region42: #{conv_bn_relu.3} parent=1 // pred_check
      _
    $region43: #{conv_bn_relu.3} parent=1 // pred_check_branch
      %492 = sbr.rel (0) target = $region45
    $region44: #{conv_bn_relu.3} parent=1 // pred_region
      %s494 = ssub.s32 8192, 8192
      %495 = vsyncadd [#allocation4], %s494
      %s496 = sshll.u32 [#allocation11], 4
      %s497 = int_to_ptr.vmem [resolvable:$true] %s496
      %502 = dma.vmem_to_hbm [thread:$0]  %s497, 8192, %s5, [#allocation4], 128, 128, 8
    $region45: #{conv_bn_relu.3} parent=1 // pred_fallthru
      _
    // Predicated region
    $region46: #{conv_bn_relu.3} parent=1 // pred_check
      _
    $region47: #{conv_bn_relu.3} parent=1 // pred_check_branch
      %504 = sbr.rel (0) target = $region49
    $region48: #{conv_bn_relu.3} parent=1 // pred_region
      %505 = dma.done [#allocation4], 8192
    $region49: #{conv_bn_relu.3} parent=1 // pred_fallthru
      _
    %506 = vsyncpa [#allocation3], 1
    %507 = vsyncpa [#allocation6], 1
    %508 = vsyncpa [#allocation9], 1
    %509 = vsyncpa [#allocation4], 1

// kernel: conv_bn_relu.2
$region0: #{conv_bn_relu.2}
  #allocation0 [shape = 'u32[]', space=smem, size = 0x4, offset = 0x4, fixed_abs, tag = 'smem constant byte address 0x4 - core index']
  #allocation1 [shape = 'u32[144,128]{1,0:T(1,128)}', space=vmem, size = 0x12000, scoped, tag = 'internal scratch']
  %s0 = inlined_call_operand.hbm [shape: bf16[512,128], index: 0, kind: input, shape index: {}]
  %s1 = inlined_call_operand.hbm [shape: bf16[128,128], index: 1, kind: input, shape index: {}]
  %s2 = inlined_call_operand.hbm [shape: bf16[512,128], index: 2, kind: output, shape index: {0}]
  %s3 = inlined_call_operand.hbm [shape: f32[8,128], index: 3, kind: output, shape index: {1}]
  %s4 = inlined_call_operand.hbm [shape: f32[8,128], index: 4, kind: output, shape index: {2}]
  %5 = xla_tuple %s2, %s3, %s4
  %s6 = sld [smem:[#allocation0]]
  $region42: #{conv_bn_relu.2} parent=0
    _
  %s8 = ssub.s32 1, %s6
  %s9 = scalar_select 0, %s8, %s6
  $region1: #{conv_bn_relu.2} parent=0
    #allocation2 [shape = 'u8[131072]{0}', space=vmem, size = 0x20000, scoped, tag = 'input window, operand 0, single buffered']
    #allocation3 [shape = 's32[1]{0}', space=sflag, size = 0x4, scoped, tag = 'scoped memory for conv_bn_relu.2']
    #allocation4 [shape = 's32[1]{0}', space=sflag, size = 0x4, scoped, tag = 'scoped memory for conv_bn_relu.2']
    #allocation5 [shape = 'u8[32768]{0}', space=vmem, size = 0x8000, scoped, tag = 'input window, operand 1, single buffered']
    #allocation6 [shape = 's32[1]{0}', space=sflag, size = 0x4, scoped, tag = 'scoped memory for conv_bn_relu.2']
    #allocation7 [shape = 'u8[131072]{0}', space=vmem, size = 0x20000, scoped, tag = 'output window, operand 0, single buffered']
    #allocation8 [shape = 'u8[4096]{0}', space=vmem, size = 0x1000, scoped, tag = 'output window, operand 1, single buffered']
    #allocation9 [shape = 's32[1]{0}', space=sflag, size = 0x4, scoped, tag = 'scoped memory for conv_bn_relu.2']
    #allocation10 [shape = 'u8[4096]{0}', space=vmem, size = 0x1000, scoped, tag = 'output window, operand 2, single buffered']
    %10 = vsyncpa [#allocation3], 0
    %11 = vsyncpa [#allocation6], 0
    %12 = vsyncpa [#allocation4], 0
    %13 = vsyncpa [#allocation9], 0
    // Predicated region
    $region2: #{conv_bn_relu.2} parent=1 // pred_check
      _
    $region3: #{conv_bn_relu.2} parent=1 // pred_check_branch
      %15 = sbr.rel (0) target = $region5
    $region4: #{conv_bn_relu.2} parent=1 // pred_region
      %s17 = ssub.s32 4096, 4096
      %18 = vsyncadd [#allocation3], %s17
      %s19 = sshll.u32 [#allocation2], 4
      %s20 = int_to_ptr.vmem [resolvable:$true] %s19
      %25 = dma.hbm_to_vmem [thread:$0]  %s0, 4096, %s20, [#allocation3], 64, 64, 4
    $region5: #{conv_bn_relu.2} parent=1 // pred_fallthru
      _
    // Predicated region
    $region6: #{conv_bn_relu.2} parent=1 // pred_check
      _
    $region7: #{conv_bn_relu.2} parent=1 // pred_check_branch
      %27 = sbr.rel (0) target = $region9
    $region8: #{conv_bn_relu.2} parent=1 // pred_region
      %s29 = ssub.s32 1024, 1024
      %30 = vsyncadd [#allocation6], %s29
      %s31 = sshll.u32 [#allocation5], 4
      %s32 = int_to_ptr.vmem [resolvable:$true] %s31
      %37 = dma.hbm_to_vmem [thread:$0]  %s1, 1024, %s32, [#allocation6], 64, 64, 4
    $region9: #{conv_bn_relu.2} parent=1 // pred_fallthru
      _
    // Predicated region
    $region10: #{conv_bn_relu.2} parent=1 // pred_check
      _
    $region11: #{conv_bn_relu.2} parent=1 // pred_check_branch
      %39 = sbr.rel (0) target = $region13
    $region12: #{conv_bn_relu.2} parent=1 // pred_region
      %40 = dma.done [#allocation3], 4096
    $region13: #{conv_bn_relu.2} parent=1 // pred_fallthru
      _
    // Predicated region
    $region14: #{conv_bn_relu.2} parent=1 // pred_check
      _
    $region15: #{conv_bn_relu.2} parent=1 // pred_check_branch
      %42 = sbr.rel (0) target = $region17
    $region16: #{conv_bn_relu.2} parent=1 // pred_region
      %43 = dma.done [#allocation6], 1024
    $region17: #{conv_bn_relu.2} parent=1 // pred_fallthru
      _
    %v45 = vld [vmem:[#allocation2] sm:$0xf]
    %v46 = vld [vmem:[#allocation2 + $0x4] sm:$0xf]
    %v47 = vld [vmem:[#allocation2 + $0x8] sm:$0xf]
    %v48 = vld [vmem:[#allocation2 + $0xc] sm:$0xf]
    %v49 = vld [vmem:[#allocation2 + $0x10] sm:$0xf]
    %v50 = vld [vmem:[#allocation2 + $0x14] sm:$0xf]
    %v51 = vld [vmem:[#allocation2 + $0x18] sm:$0xf]
    %v52 = vld [vmem:[#allocation2 + $0x1c] sm:$0xf]
    %v53 = vld [vmem:[#allocation2 + $0x20] sm:$0xf]
    %v54 = vld [vmem:[#allocation2 + $0x24] sm:$0xf]
    %v55 = vld [vmem:[#allocation2 + $0x28] sm:$0xf]
    %v56 = vld [vmem:[#allocation2 + $0x2c] sm:$0xf]
    %v57 = vld [vmem:[#allocation2 + $0x30] sm:$0xf]
    %v58 = vld [vmem:[#allocation2 + $0x34] sm:$0xf]
    %v59 = vld [vmem:[#allocation2 + $0x38] sm:$0xf]
    %v60 = vld [vmem:[#allocation2 + $0x3c] sm:$0xf]
    %v61 = vld [vmem:[#allocation2 + $0x40] sm:$0xf]
    %v62 = vld [vmem:[#allocation2 + $0x44] sm:$0xf]
    %v63 = vld [vmem:[#allocation2 + $0x48] sm:$0xf]
    %v64 = vld [vmem:[#allocation2 + $0x4c] sm:$0xf]
    %v65 = vld [vmem:[#allocation2 + $0x50] sm:$0xf]
    %v66 = vld [vmem:[#allocation2 + $0x54] sm:$0xf]
    %v67 = vld [vmem:[#allocation2 + $0x58] sm:$0xf]
    %v68 = vld [vmem:[#allocation2 + $0x5c] sm:$0xf]
    %v69 = vld [vmem:[#allocation2 + $0x60] sm:$0xf]
    %v70 = vld [vmem:[#allocation2 + $0x64] sm:$0xf]
    %v71 = vld [vmem:[#allocation2 + $0x68] sm:$0xf]
    %v72 = vld [vmem:[#allocation2 + $0x6c] sm:$0xf]
    %v73 = vld [vmem:[#allocation2 + $0x70] sm:$0xf]
    %v74 = vld [vmem:[#allocation2 + $0x74] sm:$0xf]
    %v75 = vld [vmem:[#allocation2 + $0x78] sm:$0xf]
    %v76 = vld [vmem:[#allocation2 + $0x7c] sm:$0xf]
    %v77 = vld [vmem:[#allocation2 + $0x80] sm:$0xf]
    %v78 = vld [vmem:[#allocation2 + $0x84] sm:$0xf]
    %v79 = vld [vmem:[#allocation2 + $0x88] sm:$0xf]
    %v80 = vld [vmem:[#allocation2 + $0x8c] sm:$0xf]
    %v81 = vld [vmem:[#allocation2 + $0x90] sm:$0xf]
    %v82 = vld [vmem:[#allocation2 + $0x94] sm:$0xf]
    %v83 = vld [vmem:[#allocation2 + $0x98] sm:$0xf]
    %v84 = vld [vmem:[#allocation2 + $0x9c] sm:$0xf]
    %v85 = vld [vmem:[#allocation2 + $0xa0] sm:$0xf]
    %v86 = vld [vmem:[#allocation2 + $0xa4] sm:$0xf]
    %v87 = vld [vmem:[#allocation2 + $0xa8] sm:$0xf]
    %v88 = vld [vmem:[#allocation2 + $0xac] sm:$0xf]
    %v89 = vld [vmem:[#allocation2 + $0xb0] sm:$0xf]
    %v90 = vld [vmem:[#allocation2 + $0xb4] sm:$0xf]
    %v91 = vld [vmem:[#allocation2 + $0xb8] sm:$0xf]
    %v92 = vld [vmem:[#allocation2 + $0xbc] sm:$0xf]
    %v93 = vld [vmem:[#allocation2 + $0xc0] sm:$0xf]
    %v94 = vld [vmem:[#allocation2 + $0xc4] sm:$0xf]
    %v95 = vld [vmem:[#allocation2 + $0xc8] sm:$0xf]
    %v96 = vld [vmem:[#allocation2 + $0xcc] sm:$0xf]
    %v97 = vld [vmem:[#allocation2 + $0xd0] sm:$0xf]
    %v98 = vld [vmem:[#allocation2 + $0xd4] sm:$0xf]
    %v99 = vld [vmem:[#allocation2 + $0xd8] sm:$0xf]
    %v100 = vld [vmem:[#allocation2 + $0xdc] sm:$0xf]
    %v101 = vld [vmem:[#allocation2 + $0xe0] sm:$0xf]
    %v102 = vld [vmem:[#allocation2 + $0xe4] sm:$0xf]
    %v103 = vld [vmem:[#allocation2 + $0xe8] sm:$0xf]
    %v104 = vld [vmem:[#allocation2 + $0xec] sm:$0xf]
    %v105 = vld [vmem:[#allocation2 + $0xf0] sm:$0xf]
    %v106 = vld [vmem:[#allocation2 + $0xf4] sm:$0xf]
    %v107 = vld [vmem:[#allocation2 + $0xf8] sm:$0xf]
    %v108 = vld [vmem:[#allocation2 + $0xfc] sm:$0xf]
    %v109 = vld [vmem:[#allocation5] sm:$0xf]
    %v110 = vld [vmem:[#allocation5 + $0x4] sm:$0xf]
    %v111 = vld [vmem:[#allocation5 + $0x8] sm:$0xf]
    %v112 = vld [vmem:[#allocation5 + $0xc] sm:$0xf]
    %v113 = vld [vmem:[#allocation5 + $0x10] sm:$0xf]
    %v114 = vld [vmem:[#allocation5 + $0x14] sm:$0xf]
    %v115 = vld [vmem:[#allocation5 + $0x18] sm:$0xf]
    %v116 = vld [vmem:[#allocation5 + $0x1c] sm:$0xf]
    %v117 = vld [vmem:[#allocation5 + $0x20] sm:$0xf]
    %v118 = vld [vmem:[#allocation5 + $0x24] sm:$0xf]
    %v119 = vld [vmem:[#allocation5 + $0x28] sm:$0xf]
    %v120 = vld [vmem:[#allocation5 + $0x2c] sm:$0xf]
    %v121 = vld [vmem:[#allocation5 + $0x30] sm:$0xf]
    %v122 = vld [vmem:[#allocation5 + $0x34] sm:$0xf]
    %v123 = vld [vmem:[#allocation5 + $0x38] sm:$0xf]
    %v124 = vld [vmem:[#allocation5 + $0x3c] sm:$0xf]
    %v189 = vunpack.c.l.b16 %v45
    %v190 = vunpack.c.l.b16 %v46
    %v191 = vunpack.c.l.b16 %v47
    %v192 = vunpack.c.l.b16 %v48
    %v193 = vunpack.c.l.b16 %v49
    %v194 = vunpack.c.l.b16 %v50
    %v195 = vunpack.c.l.b16 %v51
    %v196 = vunpack.c.l.b16 %v52
    %v197 = vunpack.c.l.b16 %v53
    %v198 = vunpack.c.l.b16 %v54
    %v199 = vunpack.c.l.b16 %v55
    %v200 = vunpack.c.l.b16 %v56
    %v201 = vunpack.c.l.b16 %v57
    %v202 = vunpack.c.l.b16 %v58
    %v203 = vunpack.c.l.b16 %v59
    %v204 = vunpack.c.l.b16 %v60
    %v205 = vunpack.c.l.b16 %v61
    %v206 = vunpack.c.l.b16 %v62
    %v207 = vunpack.c.l.b16 %v63
    %v208 = vunpack.c.l.b16 %v64
    %v209 = vunpack.c.l.b16 %v65
    %v210 = vunpack.c.l.b16 %v66
    %v211 = vunpack.c.l.b16 %v67
    %v212 = vunpack.c.l.b16 %v68
    %v213 = vunpack.c.l.b16 %v69
    %v214 = vunpack.c.l.b16 %v70
    %v215 = vunpack.c.l.b16 %v71
    %v216 = vunpack.c.l.b16 %v72
    %v217 = vunpack.c.l.b16 %v73
    %v218 = vunpack.c.l.b16 %v74
    %v219 = vunpack.c.l.b16 %v75
    %v220 = vunpack.c.l.b16 %v76
    %v221 = vunpack.c.l.b16 %v77
    %v222 = vunpack.c.l.b16 %v78
    %v223 = vunpack.c.l.b16 %v79
    %v224 = vunpack.c.l.b16 %v80
    %v225 = vunpack.c.l.b16 %v81
    %v226 = vunpack.c.l.b16 %v82
    %v227 = vunpack.c.l.b16 %v83
    %v228 = vunpack.c.l.b16 %v84
    %v229 = vunpack.c.l.b16 %v85
    %v230 = vunpack.c.l.b16 %v86
    %v231 = vunpack.c.l.b16 %v87
    %v232 = vunpack.c.l.b16 %v88
    %v233 = vunpack.c.l.b16 %v89
    %v234 = vunpack.c.l.b16 %v90
    %v235 = vunpack.c.l.b16 %v91
    %v236 = vunpack.c.l.b16 %v92
    %v237 = vunpack.c.l.b16 %v93
    %v238 = vunpack.c.l.b16 %v94
    %v239 = vunpack.c.l.b16 %v95
    %v240 = vunpack.c.l.b16 %v96
    %v241 = vunpack.c.l.b16 %v97
    %v242 = vunpack.c.l.b16 %v98
    %v243 = vunpack.c.l.b16 %v99
    %v244 = vunpack.c.l.b16 %v100
    %v245 = vunpack.c.l.b16 %v101
    %v246 = vunpack.c.l.b16 %v102
    %v247 = vunpack.c.l.b16 %v103
    %v248 = vunpack.c.l.b16 %v104
    %v249 = vunpack.c.l.b16 %v105
    %v250 = vunpack.c.l.b16 %v106
    %v251 = vunpack.c.l.b16 %v107
    %v252 = vunpack.c.l.b16 %v108
    %v253 = vpack.c.b16 %v190, %v189
    %v254 = vpack.c.b16 %v192, %v191
    %v255 = vpack.c.b16 %v194, %v193
    %v256 = vpack.c.b16 %v196, %v195
    %v257 = vpack.c.b16 %v198, %v197
    %v258 = vpack.c.b16 %v200, %v199
    %v259 = vpack.c.b16 %v202, %v201
    %v260 = vpack.c.b16 %v204, %v203
    %v261 = vpack.c.b16 %v206, %v205
    %v262 = vpack.c.b16 %v208, %v207
    %v263 = vpack.c.b16 %v210, %v209
    %v264 = vpack.c.b16 %v212, %v211
    %v265 = vpack.c.b16 %v214, %v213
    %v266 = vpack.c.b16 %v216, %v215
    %v267 = vpack.c.b16 %v218, %v217
    %v268 = vpack.c.b16 %v220, %v219
    %v269 = vpack.c.b16 %v222, %v221
    %v270 = vpack.c.b16 %v224, %v223
    %v271 = vpack.c.b16 %v226, %v225
    %v272 = vpack.c.b16 %v228, %v227
    %v273 = vpack.c.b16 %v230, %v229
    %v274 = vpack.c.b16 %v232, %v231
    %v275 = vpack.c.b16 %v234, %v233
    %v276 = vpack.c.b16 %v236, %v235
    %v277 = vpack.c.b16 %v238, %v237
    %v278 = vpack.c.b16 %v240, %v239
    %v279 = vpack.c.b16 %v242, %v241
    %v280 = vpack.c.b16 %v244, %v243
    %v281 = vpack.c.b16 %v246, %v245
    %v282 = vpack.c.b16 %v248, %v247
    %v283 = vpack.c.b16 %v250, %v249
    %v284 = vpack.c.b16 %v252, %v251
    %v333 = vunpack.c.l.b16 %v109
    %v334 = vunpack.c.l.b16 %v110
    %v335 = vunpack.c.l.b16 %v111
    %v336 = vunpack.c.l.b16 %v112
    %v337 = vunpack.c.l.b16 %v113
    %v338 = vunpack.c.l.b16 %v114
    %v339 = vunpack.c.l.b16 %v115
    %v340 = vunpack.c.l.b16 %v116
    %v341 = vunpack.c.l.b16 %v117
    %v342 = vunpack.c.l.b16 %v118
    %v343 = vunpack.c.l.b16 %v119
    %v344 = vunpack.c.l.b16 %v120
    %v345 = vunpack.c.l.b16 %v121
    %v346 = vunpack.c.l.b16 %v122
    %v347 = vunpack.c.l.b16 %v123
    %v348 = vunpack.c.l.b16 %v124
    %v349 = vpack.c.b16 %v334, %v333
    %v350 = vpack.c.b16 %v336, %v335
    %v351 = vpack.c.b16 %v338, %v337
    %v352 = vpack.c.b16 %v340, %v339
    %v353 = vpack.c.b16 %v342, %v341
    %v354 = vpack.c.b16 %v344, %v343
    %v355 = vpack.c.b16 %v346, %v345
    %v356 = vpack.c.b16 %v348, %v347
    %365 = vmatprep.subr.bf16.mxu0 0
    %366 = vmatpush1.bf16.msra.mxu0 %v349
    %367 = vmatprep.subr.bf16.mxu0 0
    %368 = vmatpush1.bf16.msra.mxu0 %v350
    %369 = vmatprep.subr.bf16.mxu0 0
    %370 = vmatpush1.bf16.msra.mxu0 %v351
    %371 = vmatprep.subr.bf16.mxu0 0
    %372 = vmatpush1.bf16.msra.mxu0 %v352
    %373 = vmatprep.subr.bf16.mxu0 0
    %374 = vmatpush1.bf16.msra.mxu0 %v353
    %375 = vmatprep.subr.bf16.mxu0 0
    %376 = vmatpush1.bf16.msra.mxu0 %v354
    %377 = vmatprep.subr.bf16.mxu0 0
    %378 = vmatpush1.bf16.msra.mxu0 %v355
    %379 = vmatprep.subr.bf16.mxu0 0
    %380 = vmatpush1.bf16.msra.mxu0 %v356
    %381 = vmatprep.subr.bf16.mxu0 0
    %382 = vmatpush1.bf16.msra.mxu0 0
    %383 = vmatprep.subr.bf16.mxu0 0
    %384 = vmatpush1.bf16.msra.mxu0 0
    %385 = vmatprep.subr.bf16.mxu0 0
    %386 = vmatpush1.bf16.msra.mxu0 0
    %387 = vmatprep.subr.bf16.mxu0 0
    %388 = vmatpush1.bf16.msra.mxu0 0
    %389 = vmatprep.subr.bf16.mxu0 0
    %390 = vmatpush1.bf16.msra.mxu0 0
    %391 = vmatprep.subr.bf16.mxu0 0
    %392 = vmatpush1.bf16.msra.mxu0 0
    %393 = vmatprep.subr.bf16.mxu0 0
    %394 = vmatpush1.bf16.msra.mxu0 0
    %395 = vmatprep.subr.bf16.mxu0 0
    %396 = vmatpush1.bf16.msra.mxu0 0
    %397 = vmatprep.mubr.bf16.mxu0 0
    %398 = vmatmul.mubr.bf16.gmra.mrb[0].mxu0 %v253
    %v399 = vpop.f32.mrb[0].mxu0
    %v400 = vadd.f32 0.0, %v399
    %v401 = vpop.f32.mrb[0].mxu0
    %v402 = vpop.f32.mrb[0].mxu0
    %v403 = vadd.f32 0.0, %v402
    %v404 = vpop.f32.mrb[0].mxu0
    %405 = vmatprep.mubr.bf16.mxu0 0
    %406 = vmatmul.mubr.bf16.gmra.mrb[0].mxu0 %v254
    %v407 = vpop.f32.mrb[0].mxu0
    %v408 = vadd.f32 0.0, %v407
    %v409 = vpop.f32.mrb[0].mxu0
    %v410 = vpop.f32.mrb[0].mxu0
    %v411 = vadd.f32 0.0, %v410
    %v412 = vpop.f32.mrb[0].mxu0
    %413 = vmatprep.mubr.bf16.mxu0 0
    %414 = vmatmul.mubr.bf16.gmra.mrb[0].mxu0 %v255
    %v415 = vpop.f32.mrb[0].mxu0
    %v416 = vadd.f32 0.0, %v415
    %v417 = vpop.f32.mrb[0].mxu0
    %v418 = vpop.f32.mrb[0].mxu0
    %v419 = vadd.f32 0.0, %v418
    %v420 = vpop.f32.mrb[0].mxu0
    %421 = vmatprep.mubr.bf16.mxu0 0
    %422 = vmatmul.mubr.bf16.gmra.mrb[0].mxu0 %v256
    %v423 = vpop.f32.mrb[0].mxu0
    %v424 = vadd.f32 0.0, %v423
    %v425 = vpop.f32.mrb[0].mxu0
    %v426 = vpop.f32.mrb[0].mxu0
    %v427 = vadd.f32 0.0, %v426
    %v428 = vpop.f32.mrb[0].mxu0
    %429 = vmatprep.mubr.bf16.mxu0 0
    %430 = vmatmul.mubr.bf16.gmra.mrb[0].mxu0 %v257
    %v431 = vpop.f32.mrb[0].mxu0
    %v432 = vadd.f32 0.0, %v431
    %v433 = vpop.f32.mrb[0].mxu0
    %v434 = vpop.f32.mrb[0].mxu0
    %v435 = vadd.f32 0.0, %v434
    %v436 = vpop.f32.mrb[0].mxu0
    %437 = vmatprep.mubr.bf16.mxu0 0
    %438 = vmatmul.mubr.bf16.gmra.mrb[0].mxu0 %v258
    %v439 = vpop.f32.mrb[0].mxu0
    %v440 = vadd.f32 0.0, %v439
    %v441 = vpop.f32.mrb[0].mxu0
    %v442 = vpop.f32.mrb[0].mxu0
    %v443 = vadd.f32 0.0, %v442
    %v444 = vpop.f32.mrb[0].mxu0
    %445 = vmatprep.mubr.bf16.mxu0 0
    %446 = vmatmul.mubr.bf16.gmra.mrb[0].mxu0 %v259
    %v447 = vpop.f32.mrb[0].mxu0
    %v448 = vadd.f32 0.0, %v447
    %v449 = vpop.f32.mrb[0].mxu0
    %v450 = vpop.f32.mrb[0].mxu0
    %v451 = vadd.f32 0.0, %v450
    %v452 = vpop.f32.mrb[0].mxu0
    %453 = vmatprep.mubr.bf16.mxu0 0
    %454 = vmatmul.mubr.bf16.gmra.mrb[0].mxu0 %v260
    %v455 = vpop.f32.mrb[0].mxu0
    %v456 = vadd.f32 0.0, %v455
    %v457 = vpop.f32.mrb[0].mxu0
    %v458 = vpop.f32.mrb[0].mxu0
    %v459 = vadd.f32 0.0, %v458
    %v460 = vpop.f32.mrb[0].mxu0
    %461 = vmatprep.mubr.bf16.mxu0 0
    %462 = vmatmul.mubr.bf16.gmra.mrb[0].mxu0 %v261
    %v463 = vpop.f32.mrb[0].mxu0
    %v464 = vadd.f32 0.0, %v463
    %v465 = vpop.f32.mrb[0].mxu0
    %v466 = vpop.f32.mrb[0].mxu0
    %v467 = vadd.f32 0.0, %v466
    %v468 = vpop.f32.mrb[0].mxu0
    %469 = vmatprep.mubr.bf16.mxu0 0
    %470 = vmatmul.mubr.bf16.gmra.mrb[0].mxu0 %v262
    %v471 = vpop.f32.mrb[0].mxu0
    %v472 = vadd.f32 0.0, %v471
    %v473 = vpop.f32.mrb[0].mxu0
    %v474 = vpop.f32.mrb[0].mxu0
    %v475 = vadd.f32 0.0, %v474
    %v476 = vpop.f32.mrb[0].mxu0
    %477 = vmatprep.mubr.bf16.mxu0 0
    %478 = vmatmul.mubr.bf16.gmra.mrb[0].mxu0 %v263
    %v479 = vpop.f32.mrb[0].mxu0
    %v480 = vadd.f32 0.0, %v479
    %v481 = vpop.f32.mrb[0].mxu0
    %v482 = vpop.f32.mrb[0].mxu0
    %v483 = vadd.f32 0.0, %v482
    %v484 = vpop.f32.mrb[0].mxu0
    %485 = vmatprep.mubr.bf16.mxu0 0
    %486 = vmatmul.mubr.bf16.gmra.mrb[0].mxu0 %v264
    %v487 = vpop.f32.mrb[0].mxu0
    %v488 = vadd.f32 0.0, %v487
    %v489 = vpop.f32.mrb[0].mxu0
    %v490 = vpop.f32.mrb[0].mxu0
    %v491 = vadd.f32 0.0, %v490
    %v492 = vpop.f32.mrb[0].mxu0
    %493 = vmatprep.mubr.bf16.mxu0 0
    %494 = vmatmul.mubr.bf16.gmra.mrb[0].mxu0 %v265
    %v495 = vpop.f32.mrb[0].mxu0
    %v496 = vadd.f32 0.0, %v495
    %v497 = vpop.f32.mrb[0].mxu0
    %v498 = vpop.f32.mrb[0].mxu0
    %v499 = vadd.f32 0.0, %v498
    %v500 = vpop.f32.mrb[0].mxu0
    %501 = vmatprep.mubr.bf16.mxu0 0
    %502 = vmatmul.mubr.bf16.gmra.mrb[0].mxu0 %v266
    %v503 = vpop.f32.mrb[0].mxu0
    %v504 = vadd.f32 0.0, %v503
    %v505 = vpop.f32.mrb[0].mxu0
    %v506 = vpop.f32.mrb[0].mxu0
    %v507 = vadd.f32 0.0, %v506
    %v508 = vpop.f32.mrb[0].mxu0
    %509 = vmatprep.mubr.bf16.mxu0 0
    %510 = vmatmul.mubr.bf16.gmra.mrb[0].mxu0 %v267
    %v511 = vpop.f32.mrb[0].mxu0
    %v512 = vadd.f32 0.0, %v511
    %v513 = vpop.f32.mrb[0].mxu0
    %v514 = vpop.f32.mrb[0].mxu0
    %v515 = vadd.f32 0.0, %v514
    %v516 = vpop.f32.mrb[0].mxu0
    %517 = vmatprep.mubr.bf16.mxu0 0
    %518 = vmatmul.mubr.bf16.gmra.mrb[0].mxu0 %v268
    %v519 = vpop.f32.mrb[0].mxu0
    %v520 = vadd.f32 0.0, %v519
    %v521 = vpop.f32.mrb[0].mxu0
    %v522 = vpop.f32.mrb[0].mxu0
    %v523 = vadd.f32 0.0, %v522
    %v524 = vpop.f32.mrb[0].mxu0
    %525 = vmatprep.mubr.bf16.mxu0 0
    %526 = vmatmul.mubr.bf16.gmra.mrb[0].mxu0 %v269
    %v527 = vpop.f32.mrb[0].mxu0
    %v528 = vadd.f32 0.0, %v527
    %v529 = vpop.f32.mrb[0].mxu0
    %v530 = vpop.f32.mrb[0].mxu0
    %v531 = vadd.f32 0.0, %v530
    %v532 = vpop.f32.mrb[0].mxu0
    %533 = vmatprep.mubr.bf16.mxu0 0
    %534 = vmatmul.mubr.bf16.gmra.mrb[0].mxu0 %v270
    %v535 = vpop.f32.mrb[0].mxu0
    %v536 = vadd.f32 0.0, %v535
    %v537 = vpop.f32.mrb[0].mxu0
    %v538 = vpop.f32.mrb[0].mxu0
    %v539 = vadd.f32 0.0, %v538
    %v540 = vpop.f32.mrb[0].mxu0
    %541 = vmatprep.mubr.bf16.mxu0 0
    %542 = vmatmul.mubr.bf16.gmra.mrb[0].mxu0 %v271
    %v543 = vpop.f32.mrb[0].mxu0
    %v544 = vadd.f32 0.0, %v543
    %v545 = vpop.f32.mrb[0].mxu0
    %v546 = vpop.f32.mrb[0].mxu0
    %v547 = vadd.f32 0.0, %v546
    %v548 = vpop.f32.mrb[0].mxu0
    %549 = vmatprep.mubr.bf16.mxu0 0
    %550 = vmatmul.mubr.bf16.gmra.mrb[0].mxu0 %v272
    %v551 = vpop.f32.mrb[0].mxu0
    %v552 = vadd.f32 0.0, %v551
    %v553 = vpop.f32.mrb[0].mxu0
    %v554 = vpop.f32.mrb[0].mxu0
    %v555 = vadd.f32 0.0, %v554
    %v556 = vpop.f32.mrb[0].mxu0
    %557 = vmatprep.mubr.bf16.mxu0 0
    %558 = vmatmul.mubr.bf16.gmra.mrb[0].mxu0 %v273
    %v559 = vpop.f32.mrb[0].mxu0
    %v560 = vadd.f32 0.0, %v559
    %v561 = vpop.f32.mrb[0].mxu0
    %v562 = vpop.f32.mrb[0].mxu0
    %v563 = vadd.f32 0.0, %v562
    %v564 = vpop.f32.mrb[0].mxu0
    %565 = vmatprep.mubr.bf16.mxu0 0
    %566 = vmatmul.mubr.bf16.gmra.mrb[0].mxu0 %v274
    %v567 = vpop.f32.mrb[0].mxu0
    %v568 = vadd.f32 0.0, %v567
    %v569 = vpop.f32.mrb[0].mxu0
    %v570 = vpop.f32.mrb[0].mxu0
    %v571 = vadd.f32 0.0, %v570
    %v572 = vpop.f32.mrb[0].mxu0
    %573 = vmatprep.mubr.bf16.mxu0 0
    %574 = vmatmul.mubr.bf16.gmra.mrb[0].mxu0 %v275
    %v575 = vpop.f32.mrb[0].mxu0
    %v576 = vadd.f32 0.0, %v575
    %v577 = vpop.f32.mrb[0].mxu0
    %v578 = vpop.f32.mrb[0].mxu0
    %v579 = vadd.f32 0.0, %v578
    %v580 = vpop.f32.mrb[0].mxu0
    %581 = vmatprep.mubr.bf16.mxu0 0
    %582 = vmatmul.mubr.bf16.gmra.mrb[0].mxu0 %v276
    %v583 = vpop.f32.mrb[0].mxu0
    %v584 = vadd.f32 0.0, %v583
    %v585 = vpop.f32.mrb[0].mxu0
    %v586 = vpop.f32.mrb[0].mxu0
    %v587 = vadd.f32 0.0, %v586
    %v588 = vpop.f32.mrb[0].mxu0
    %589 = vmatprep.mubr.bf16.mxu0 0
    %590 = vmatmul.mubr.bf16.gmra.mrb[0].mxu0 %v277
    %v591 = vpop.f32.mrb[0].mxu0
    %v592 = vadd.f32 0.0, %v591
    %v593 = vpop.f32.mrb[0].mxu0
    %v594 = vpop.f32.mrb[0].mxu0
    %v595 = vadd.f32 0.0, %v594
    %v596 = vpop.f32.mrb[0].mxu0
    %597 = vmatprep.mubr.bf16.mxu0 0
    %598 = vmatmul.mubr.bf16.gmra.mrb[0].mxu0 %v278
    %v599 = vpop.f32.mrb[0].mxu0
    %v600 = vadd.f32 0.0, %v599
    %v601 = vpop.f32.mrb[0].mxu0
    %v602 = vpop.f32.mrb[0].mxu0
    %v603 = vadd.f32 0.0, %v602
    %v604 = vpop.f32.mrb[0].mxu0
    %605 = vmatprep.mubr.bf16.mxu0 0
    %606 = vmatmul.mubr.bf16.gmra.mrb[0].mxu0 %v279
    %v607 = vpop.f32.mrb[0].mxu0
    %v608 = vadd.f32 0.0, %v607
    %v609 = vpop.f32.mrb[0].mxu0
    %v610 = vpop.f32.mrb[0].mxu0
    %v611 = vadd.f32 0.0, %v610
    %v612 = vpop.f32.mrb[0].mxu0
    %613 = vmatprep.mubr.bf16.mxu0 0
    %614 = vmatmul.mubr.bf16.gmra.mrb[0].mxu0 %v280
    %v615 = vpop.f32.mrb[0].mxu0
    %v616 = vadd.f32 0.0, %v615
    %v617 = vpop.f32.mrb[0].mxu0
    %v618 = vpop.f32.mrb[0].mxu0
    %v619 = vadd.f32 0.0, %v618
    %v620 = vpop.f32.mrb[0].mxu0
    %621 = vmatprep.mubr.bf16.mxu0 0
    %622 = vmatmul.mubr.bf16.gmra.mrb[0].mxu0 %v281
    %v623 = vpop.f32.mrb[0].mxu0
    %v624 = vadd.f32 0.0, %v623
    %v625 = vpop.f32.mrb[0].mxu0
    %v626 = vpop.f32.mrb[0].mxu0
    %v627 = vadd.f32 0.0, %v626
    %v628 = vpop.f32.mrb[0].mxu0
    %629 = vmatprep.mubr.bf16.mxu0 0
    %630 = vmatmul.mubr.bf16.gmra.mrb[0].mxu0 %v282
    %v631 = vpop.f32.mrb[0].mxu0
    %v632 = vadd.f32 0.0, %v631
    %v633 = vpop.f32.mrb[0].mxu0
    %v634 = vpop.f32.mrb[0].mxu0
    %v635 = vadd.f32 0.0, %v634
    %v636 = vpop.f32.mrb[0].mxu0
    %637 = vmatprep.mubr.bf16.mxu0 0
    %638 = vmatmul.mubr.bf16.gmra.mrb[0].mxu0 %v283
    %v639 = vpop.f32.mrb[0].mxu0
    %v640 = vadd.f32 0.0, %v639
    %v641 = vpop.f32.mrb[0].mxu0
    %v642 = vpop.f32.mrb[0].mxu0
    %v643 = vadd.f32 0.0, %v642
    %v644 = vpop.f32.mrb[0].mxu0
    %645 = vmatprep.mubr.bf16.mxu0 0
    %646 = vmatmul.mubr.bf16.gmra.mrb[0].mxu0 %v284
    %v647 = vpop.f32.mrb[0].mxu0
    %v648 = vadd.f32 0.0, %v647
    %v649 = vpop.f32.mrb[0].mxu0
    %v650 = vpop.f32.mrb[0].mxu0
    %v651 = vadd.f32 0.0, %v650
    %v652 = vpop.f32.mrb[0].mxu0
    %653 = vdwg.mxu0
    %v654 = vpack.c.bf16 %v403, %v400
    %v655 = vpack.c.bf16 %v411, %v408
    %v656 = vpack.c.bf16 %v419, %v416
    %v657 = vpack.c.bf16 %v427, %v424
    %v658 = vpack.c.bf16 %v435, %v432
    %v659 = vpack.c.bf16 %v443, %v440
    %v660 = vpack.c.bf16 %v451, %v448
    %v661 = vpack.c.bf16 %v459, %v456
    %v662 = vpack.c.bf16 %v467, %v464
    %v663 = vpack.c.bf16 %v475, %v472
    %v664 = vpack.c.bf16 %v483, %v480
    %v665 = vpack.c.bf16 %v491, %v488
    %v666 = vpack.c.bf16 %v499, %v496
    %v667 = vpack.c.bf16 %v507, %v504
    %v668 = vpack.c.bf16 %v515, %v512
    %v669 = vpack.c.bf16 %v523, %v520
    %v670 = vpack.c.bf16 %v531, %v528
    %v671 = vpack.c.bf16 %v539, %v536
    %v672 = vpack.c.bf16 %v547, %v544
    %v673 = vpack.c.bf16 %v555, %v552
    %v674 = vpack.c.bf16 %v563, %v560
    %v675 = vpack.c.bf16 %v571, %v568
    %v676 = vpack.c.bf16 %v579, %v576
    %v677 = vpack.c.bf16 %v587, %v584
    %v678 = vpack.c.bf16 %v595, %v592
    %v679 = vpack.c.bf16 %v603, %v600
    %v680 = vpack.c.bf16 %v611, %v608
    %v681 = vpack.c.bf16 %v619, %v616
    %v682 = vpack.c.bf16 %v627, %v624
    %v683 = vpack.c.bf16 %v635, %v632
    %v684 = vpack.c.bf16 %v643, %v640
    %v685 = vpack.c.bf16 %v651, %v648
    %v718 = vunpack.c.l.b16 %v654
    %v719 = vunpack.c.h.b16 %v654
    %v720 = vunpack.c.l.b16 %v655
    %v721 = vunpack.c.h.b16 %v655
    %v722 = vunpack.c.l.b16 %v656
    %v723 = vunpack.c.h.b16 %v656
    %v724 = vunpack.c.l.b16 %v657
    %v725 = vunpack.c.h.b16 %v657
    %v726 = vunpack.c.l.b16 %v658
    %v727 = vunpack.c.h.b16 %v658
    %v728 = vunpack.c.l.b16 %v659
    %v729 = vunpack.c.h.b16 %v659
    %v730 = vunpack.c.l.b16 %v660
    %v731 = vunpack.c.h.b16 %v660
    %v732 = vunpack.c.l.b16 %v661
    %v733 = vunpack.c.h.b16 %v661
    %v734 = vunpack.c.l.b16 %v662
    %v735 = vunpack.c.h.b16 %v662
    %v736 = vunpack.c.l.b16 %v663
    %v737 = vunpack.c.h.b16 %v663
    %v738 = vunpack.c.l.b16 %v664
    %v739 = vunpack.c.h.b16 %v664
    %v740 = vunpack.c.l.b16 %v665
    %v741 = vunpack.c.h.b16 %v665
    %v742 = vunpack.c.l.b16 %v666
    %v743 = vunpack.c.h.b16 %v666
    %v744 = vunpack.c.l.b16 %v667
    %v745 = vunpack.c.h.b16 %v667
    %v746 = vunpack.c.l.b16 %v668
    %v747 = vunpack.c.h.b16 %v668
    %v748 = vunpack.c.l.b16 %v669
    %v749 = vunpack.c.h.b16 %v669
    %v750 = vunpack.c.l.b16 %v670
    %v751 = vunpack.c.h.b16 %v670
    %v752 = vunpack.c.l.b16 %v671
    %v753 = vunpack.c.h.b16 %v671
    %v754 = vunpack.c.l.b16 %v672
    %v755 = vunpack.c.h.b16 %v672
    %v756 = vunpack.c.l.b16 %v673
    %v757 = vunpack.c.h.b16 %v673
    %v758 = vunpack.c.l.b16 %v674
    %v759 = vunpack.c.h.b16 %v674
    %v760 = vunpack.c.l.b16 %v675
    %v761 = vunpack.c.h.b16 %v675
    %v762 = vunpack.c.l.b16 %v676
    %v763 = vunpack.c.h.b16 %v676
    %v764 = vunpack.c.l.b16 %v677
    %v765 = vunpack.c.h.b16 %v677
    %v766 = vunpack.c.l.b16 %v678
    %v767 = vunpack.c.h.b16 %v678
    %v768 = vunpack.c.l.b16 %v679
    %v769 = vunpack.c.h.b16 %v679
    %v770 = vunpack.c.l.b16 %v680
    %v771 = vunpack.c.h.b16 %v680
    %v772 = vunpack.c.l.b16 %v681
    %v773 = vunpack.c.h.b16 %v681
    %v774 = vunpack.c.l.b16 %v682
    %v775 = vunpack.c.h.b16 %v682
    %v776 = vunpack.c.l.b16 %v683
    %v777 = vunpack.c.h.b16 %v683
    %v778 = vunpack.c.l.b16 %v684
    %v779 = vunpack.c.h.b16 %v684
    %v780 = vunpack.c.l.b16 %v685
    %v781 = vunpack.c.h.b16 %v685
    %v782 = vpack.c.b16 %v718, %v718
    %v783 = vpack.c.b16 %v719, %v719
    %v784 = vpack.c.b16 %v720, %v720
    %v785 = vpack.c.b16 %v721, %v721
    %v786 = vpack.c.b16 %v722, %v722
    %v787 = vpack.c.b16 %v723, %v723
    %v788 = vpack.c.b16 %v724, %v724
    %v789 = vpack.c.b16 %v725, %v725
    %v790 = vpack.c.b16 %v726, %v726
    %v791 = vpack.c.b16 %v727, %v727
    %v792 = vpack.c.b16 %v728, %v728
    %v793 = vpack.c.b16 %v729, %v729
    %v794 = vpack.c.b16 %v730, %v730
    %v795 = vpack.c.b16 %v731, %v731
    %v796 = vpack.c.b16 %v732, %v732
    %v797 = vpack.c.b16 %v733, %v733
    %v798 = vpack.c.b16 %v734, %v734
    %v799 = vpack.c.b16 %v735, %v735
    %v800 = vpack.c.b16 %v736, %v736
    %v801 = vpack.c.b16 %v737, %v737
    %v802 = vpack.c.b16 %v738, %v738
    %v803 = vpack.c.b16 %v739, %v739
    %v804 = vpack.c.b16 %v740, %v740
    %v805 = vpack.c.b16 %v741, %v741
    %v806 = vpack.c.b16 %v742, %v742
    %v807 = vpack.c.b16 %v743, %v743
    %v808 = vpack.c.b16 %v744, %v744
    %v809 = vpack.c.b16 %v745, %v745
    %v810 = vpack.c.b16 %v746, %v746
    %v811 = vpack.c.b16 %v747, %v747
    %v812 = vpack.c.b16 %v748, %v748
    %v813 = vpack.c.b16 %v749, %v749
    %v814 = vpack.c.b16 %v750, %v750
    %v815 = vpack.c.b16 %v751, %v751
    %v816 = vpack.c.b16 %v752, %v752
    %v817 = vpack.c.b16 %v753, %v753
    %v818 = vpack.c.b16 %v754, %v754
    %v819 = vpack.c.b16 %v755, %v755
    %v820 = vpack.c.b16 %v756, %v756
    %v821 = vpack.c.b16 %v757, %v757
    %v822 = vpack.c.b16 %v758, %v758
    %v823 = vpack.c.b16 %v759, %v759
    %v824 = vpack.c.b16 %v760, %v760
    %v825 = vpack.c.b16 %v761, %v761
    %v826 = vpack.c.b16 %v762, %v762
    %v827 = vpack.c.b16 %v763, %v763
    %v828 = vpack.c.b16 %v764, %v764
    %v829 = vpack.c.b16 %v765, %v765
    %v830 = vpack.c.b16 %v766, %v766
    %v831 = vpack.c.b16 %v767, %v767
    %v832 = vpack.c.b16 %v768, %v768
    %v833 = vpack.c.b16 %v769, %v769
    %v834 = vpack.c.b16 %v770, %v770
    %v835 = vpack.c.b16 %v771, %v771
    %v836 = vpack.c.b16 %v772, %v772
    %v837 = vpack.c.b16 %v773, %v773
    %v838 = vpack.c.b16 %v774, %v774
    %v839 = vpack.c.b16 %v775, %v775
    %v840 = vpack.c.b16 %v776, %v776
    %v841 = vpack.c.b16 %v777, %v777
    %v842 = vpack.c.b16 %v778, %v778
    %v843 = vpack.c.b16 %v779, %v779
    %v844 = vpack.c.b16 %v780, %v780
    %v845 = vpack.c.b16 %v781, %v781
    %910 = vst [vmem:[#allocation7] sm:$0xf] %v782
    %911 = vst [vmem:[#allocation7 + $0x4] sm:$0xf] %v783
    %912 = vst [vmem:[#allocation7 + $0x8] sm:$0xf] %v784
    %913 = vst [vmem:[#allocation7 + $0xc] sm:$0xf] %v785
    %914 = vst [vmem:[#allocation7 + $0x10] sm:$0xf] %v786
    %915 = vst [vmem:[#allocation7 + $0x14] sm:$0xf] %v787
    %916 = vst [vmem:[#allocation7 + $0x18] sm:$0xf] %v788
    %917 = vst [vmem:[#allocation7 + $0x1c] sm:$0xf] %v789
    %918 = vst [vmem:[#allocation7 + $0x20] sm:$0xf] %v790
    %919 = vst [vmem:[#allocation7 + $0x24] sm:$0xf] %v791
    %920 = vst [vmem:[#allocation7 + $0x28] sm:$0xf] %v792
    %921 = vst [vmem:[#allocation7 + $0x2c] sm:$0xf] %v793
    %922 = vst [vmem:[#allocation7 + $0x30] sm:$0xf] %v794
    %923 = vst [vmem:[#allocation7 + $0x34] sm:$0xf] %v795
    %924 = vst [vmem:[#allocation7 + $0x38] sm:$0xf] %v796
    %925 = vst [vmem:[#allocation7 + $0x3c] sm:$0xf] %v797
    %926 = vst [vmem:[#allocation7 + $0x40] sm:$0xf] %v798
    %927 = vst [vmem:[#allocation7 + $0x44] sm:$0xf] %v799
    %928 = vst [vmem:[#allocation7 + $0x48] sm:$0xf] %v800
    %929 = vst [vmem:[#allocation7 + $0x4c] sm:$0xf] %v801
    %930 = vst [vmem:[#allocation7 + $0x50] sm:$0xf] %v802
    %931 = vst [vmem:[#allocation7 + $0x54] sm:$0xf] %v803
    %932 = vst [vmem:[#allocation7 + $0x58] sm:$0xf] %v804
    %933 = vst [vmem:[#allocation7 + $0x5c] sm:$0xf] %v805
    %934 = vst [vmem:[#allocation7 + $0x60] sm:$0xf] %v806
    %935 = vst [vmem:[#allocation7 + $0x64] sm:$0xf] %v807
    %936 = vst [vmem:[#allocation7 + $0x68] sm:$0xf] %v808
    %937 = vst [vmem:[#allocation7 + $0x6c] sm:$0xf] %v809
    %938 = vst [vmem:[#allocation7 + $0x70] sm:$0xf] %v810
    %939 = vst [vmem:[#allocation7 + $0x74] sm:$0xf] %v811
    %940 = vst [vmem:[#allocation7 + $0x78] sm:$0xf] %v812
    %941 = vst [vmem:[#allocation7 + $0x7c] sm:$0xf] %v813
    %942 = vst [vmem:[#allocation7 + $0x80] sm:$0xf] %v814
    %943 = vst [vmem:[#allocation7 + $0x84] sm:$0xf] %v815
    %944 = vst [vmem:[#allocation7 + $0x88] sm:$0xf] %v816
    %945 = vst [vmem:[#allocation7 + $0x8c] sm:$0xf] %v817
    %946 = vst [vmem:[#allocation7 + $0x90] sm:$0xf] %v818
    %947 = vst [vmem:[#allocation7 + $0x94] sm:$0xf] %v819
    %948 = vst [vmem:[#allocation7 + $0x98] sm:$0xf] %v820
    %949 = vst [vmem:[#allocation7 + $0x9c] sm:$0xf] %v821
    %950 = vst [vmem:[#allocation7 + $0xa0] sm:$0xf] %v822
    %951 = vst [vmem:[#allocation7 + $0xa4] sm:$0xf] %v823
    %952 = vst [vmem:[#allocation7 + $0xa8] sm:$0xf] %v824
    %953 = vst [vmem:[#allocation7 + $0xac] sm:$0xf] %v825
    %954 = vst [vmem:[#allocation7 + $0xb0] sm:$0xf] %v826
    %955 = vst [vmem:[#allocation7 + $0xb4] sm:$0xf] %v827
    %956 = vst [vmem:[#allocation7 + $0xb8] sm:$0xf] %v828
    %957 = vst [vmem:[#allocation7 + $0xbc] sm:$0xf] %v829
    %958 = vst [vmem:[#allocation7 + $0xc0] sm:$0xf] %v830
    %959 = vst [vmem:[#allocation7 + $0xc4] sm:$0xf] %v831
    %960 = vst [vmem:[#allocation7 + $0xc8] sm:$0xf] %v832
    %961 = vst [vmem:[#allocation7 + $0xcc] sm:$0xf] %v833
    %962 = vst [vmem:[#allocation7 + $0xd0] sm:$0xf] %v834
    %963 = vst [vmem:[#allocation7 + $0xd4] sm:$0xf] %v835
    %964 = vst [vmem:[#allocation7 + $0xd8] sm:$0xf] %v836
    %965 = vst [vmem:[#allocation7 + $0xdc] sm:$0xf] %v837
    %966 = vst [vmem:[#allocation7 + $0xe0] sm:$0xf] %v838
    %967 = vst [vmem:[#allocation7 + $0xe4] sm:$0xf] %v839
    %968 = vst [vmem:[#allocation7 + $0xe8] sm:$0xf] %v840
    %969 = vst [vmem:[#allocation7 + $0xec] sm:$0xf] %v841
    %970 = vst [vmem:[#allocation7 + $0xf0] sm:$0xf] %v842
    %971 = vst [vmem:[#allocation7 + $0xf4] sm:$0xf] %v843
    %972 = vst [vmem:[#allocation7 + $0xf8] sm:$0xf] %v844
    %973 = vst [vmem:[#allocation7 + $0xfc] sm:$0xf] %v845
    %v974 = vlaneseq
    %v975 = vshrl.u32 %v974, 7
    %vm976 = vcmp.eq.s32.totalorder %v975, 0
    %v977 = vadd.f32 %v400, %v403
    %v978 = vadd.f32 %v977, %v408
    %v979 = vadd.f32 %v978, %v411
    %v980 = vadd.f32 %v979, %v416
    %v981 = vadd.f32 %v980, %v419
    %v982 = vadd.f32 %v981, %v424
    %v983 = vadd.f32 %v982, %v427
    %v984 = vadd.f32 %v983, %v432
    %v985 = vadd.f32 %v984, %v435
    %v986 = vadd.f32 %v985, %v440
    %v987 = vadd.f32 %v986, %v443
    %v988 = vadd.f32 %v987, %v448
    %v989 = vadd.f32 %v988, %v451
    %v990 = vadd.f32 %v989, %v456
    %v991 = vadd.f32 %v990, %v459
    %v992 = vadd.f32 %v991, %v464
    %v993 = vadd.f32 %v992, %v467
    %v994 = vadd.f32 %v993, %v472
    %v995 = vadd.f32 %v994, %v475
    %v996 = vadd.f32 %v995, %v480
    %v997 = vadd.f32 %v996, %v483
    %v998 = vadd.f32 %v997, %v488
    %v999 = vadd.f32 %v998, %v491
    %v1000 = vadd.f32 %v999, %v496
    %v1001 = vadd.f32 %v1000, %v499
    %v1002 = vadd.f32 %v1001, %v504
    %v1003 = vadd.f32 %v1002, %v507
    %v1004 = vadd.f32 %v1003, %v512
    %v1005 = vadd.f32 %v1004, %v515
    %v1006 = vadd.f32 %v1005, %v520
    %v1007 = vadd.f32 %v1006, %v523
    %v1008 = vadd.f32 %v1007, %v528
    %v1009 = vadd.f32 %v1008, %v531
    %v1010 = vadd.f32 %v1009, %v536
    %v1011 = vadd.f32 %v1010, %v539
    %v1012 = vadd.f32 %v1011, %v544
    %v1013 = vadd.f32 %v1012, %v547
    %v1014 = vadd.f32 %v1013, %v552
    %v1015 = vadd.f32 %v1014, %v555
    %v1016 = vadd.f32 %v1015, %v560
    %v1017 = vadd.f32 %v1016, %v563
    %v1018 = vadd.f32 %v1017, %v568
    %v1019 = vadd.f32 %v1018, %v571
    %v1020 = vadd.f32 %v1019, %v576
    %v1021 = vadd.f32 %v1020, %v579
    %v1022 = vadd.f32 %v1021, %v584
    %v1023 = vadd.f32 %v1022, %v587
    %v1024 = vadd.f32 %v1023, %v592
    %v1025 = vadd.f32 %v1024, %v595
    %v1026 = vadd.f32 %v1025, %v600
    %v1027 = vadd.f32 %v1026, %v603
    %v1028 = vadd.f32 %v1027, %v608
    %v1029 = vadd.f32 %v1028, %v611
    %v1030 = vadd.f32 %v1029, %v616
    %v1031 = vadd.f32 %v1030, %v619
    %v1032 = vadd.f32 %v1031, %v624
    %v1033 = vadd.f32 %v1032, %v627
    %v1034 = vadd.f32 %v1033, %v632
    %v1035 = vadd.f32 %v1034, %v635
    %v1036 = vadd.f32 %v1035, %v640
    %v1037 = vadd.f32 %v1036, %v643
    %v1038 = vadd.f32 %v1037, %v648
    %v1039 = vadd.f32 %v1038, %v651
    %v1040 = vrot.slane %v1039, 4
    %v1041 = vadd.f32 %v1039, %v1040
    %v1042 = vrot.slane %v1041, 2
    %v1043 = vadd.f32 %v1041, %v1042
    %v1044 = vrot.slane %v1043, 1
    %v1045 = vadd.f32 %v1043, %v1044
    %v1046 = vsel %vm976, %v1045, 0.0
    %1047 = vst [vmem:[#allocation8] sm:$0xff] %v1046
    %v1048 = vmul.f32 %v400, %v400
    %v1049 = vmul.f32 %v403, %v403
    %v1050 = vmul.f32 %v408, %v408
    %v1051 = vmul.f32 %v411, %v411
    %v1052 = vmul.f32 %v416, %v416
    %v1053 = vmul.f32 %v419, %v419
    %v1054 = vmul.f32 %v424, %v424
    %v1055 = vmul.f32 %v427, %v427
    %v1056 = vmul.f32 %v432, %v432
    %v1057 = vmul.f32 %v435, %v435
    %v1058 = vmul.f32 %v440, %v440
    %v1059 = vmul.f32 %v443, %v443
    %v1060 = vmul.f32 %v448, %v448
    %v1061 = vmul.f32 %v451, %v451
    %v1062 = vmul.f32 %v456, %v456
    %v1063 = vmul.f32 %v459, %v459
    %v1064 = vmul.f32 %v464, %v464
    %v1065 = vmul.f32 %v467, %v467
    %v1066 = vmul.f32 %v472, %v472
    %v1067 = vmul.f32 %v475, %v475
    %v1068 = vmul.f32 %v480, %v480
    %v1069 = vmul.f32 %v483, %v483
    %v1070 = vmul.f32 %v488, %v488
    %v1071 = vmul.f32 %v491, %v491
    %v1072 = vmul.f32 %v496, %v496
    %v1073 = vmul.f32 %v499, %v499
    %v1074 = vmul.f32 %v504, %v504
    %v1075 = vmul.f32 %v507, %v507
    %v1076 = vmul.f32 %v512, %v512
    %v1077 = vmul.f32 %v515, %v515
    %v1078 = vmul.f32 %v520, %v520
    %v1079 = vmul.f32 %v523, %v523
    %v1080 = vmul.f32 %v528, %v528
    %v1081 = vmul.f32 %v531, %v531
    %v1082 = vmul.f32 %v536, %v536
    %v1083 = vmul.f32 %v539, %v539
    %v1084 = vmul.f32 %v544, %v544
    %v1085 = vmul.f32 %v547, %v547
    %v1086 = vmul.f32 %v552, %v552
    %v1087 = vmul.f32 %v555, %v555
    %v1088 = vmul.f32 %v560, %v560
    %v1089 = vmul.f32 %v563, %v563
    %v1090 = vmul.f32 %v568, %v568
    %v1091 = vmul.f32 %v571, %v571
    %v1092 = vmul.f32 %v576, %v576
    %v1093 = vmul.f32 %v579, %v579
    %v1094 = vmul.f32 %v584, %v584
    %v1095 = vmul.f32 %v587, %v587
    %v1096 = vmul.f32 %v592, %v592
    %v1097 = vmul.f32 %v595, %v595
    %v1098 = vmul.f32 %v600, %v600
    %v1099 = vmul.f32 %v603, %v603
    %v1100 = vmul.f32 %v608, %v608
    %v1101 = vmul.f32 %v611, %v611
    %v1102 = vmul.f32 %v616, %v616
    %v1103 = vmul.f32 %v619, %v619
    %v1104 = vmul.f32 %v624, %v624
    %v1105 = vmul.f32 %v627, %v627
    %v1106 = vmul.f32 %v632, %v632
    %v1107 = vmul.f32 %v635, %v635
    %v1108 = vmul.f32 %v640, %v640
    %v1109 = vmul.f32 %v643, %v643
    %v1110 = vmul.f32 %v648, %v648
    %v1111 = vmul.f32 %v651, %v651
    %v1112 = vadd.f32 %v1048, %v1049
    %v1113 = vadd.f32 %v1112, %v1050
    %v1114 = vadd.f32 %v1113, %v1051
    %v1115 = vadd.f32 %v1114, %v1052
    %v1116 = vadd.f32 %v1115, %v1053
    %v1117 = vadd.f32 %v1116, %v1054
    %v1118 = vadd.f32 %v1117, %v1055
    %v1119 = vadd.f32 %v1118, %v1056
    %v1120 = vadd.f32 %v1119, %v1057
    %v1121 = vadd.f32 %v1120, %v1058
    %v1122 = vadd.f32 %v1121, %v1059
    %v1123 = vadd.f32 %v1122, %v1060
    %v1124 = vadd.f32 %v1123, %v1061
    %v1125 = vadd.f32 %v1124, %v1062
    %v1126 = vadd.f32 %v1125, %v1063
    %v1127 = vadd.f32 %v1126, %v1064
    %v1128 = vadd.f32 %v1127, %v1065
    %v1129 = vadd.f32 %v1128, %v1066
    %v1130 = vadd.f32 %v1129, %v1067
    %v1131 = vadd.f32 %v1130, %v1068
    %v1132 = vadd.f32 %v1131, %v1069
    %v1133 = vadd.f32 %v1132, %v1070
    %v1134 = vadd.f32 %v1133, %v1071
    %v1135 = vadd.f32 %v1134, %v1072
    %v1136 = vadd.f32 %v1135, %v1073
    %v1137 = vadd.f32 %v1136, %v1074
    %v1138 = vadd.f32 %v1137, %v1075
    %v1139 = vadd.f32 %v1138, %v1076
    %v1140 = vadd.f32 %v1139, %v1077
    %v1141 = vadd.f32 %v1140, %v1078
    %v1142 = vadd.f32 %v1141, %v1079
    %v1143 = vadd.f32 %v1142, %v1080
    %v1144 = vadd.f32 %v1143, %v1081
    %v1145 = vadd.f32 %v1144, %v1082
    %v1146 = vadd.f32 %v1145, %v1083
    %v1147 = vadd.f32 %v1146, %v1084
    %v1148 = vadd.f32 %v1147, %v1085
    %v1149 = vadd.f32 %v1148, %v1086
    %v1150 = vadd.f32 %v1149, %v1087
    %v1151 = vadd.f32 %v1150, %v1088
    %v1152 = vadd.f32 %v1151, %v1089
    %v1153 = vadd.f32 %v1152, %v1090
    %v1154 = vadd.f32 %v1153, %v1091
    %v1155 = vadd.f32 %v1154, %v1092
    %v1156 = vadd.f32 %v1155, %v1093
    %v1157 = vadd.f32 %v1156, %v1094
    %v1158 = vadd.f32 %v1157, %v1095
    %v1159 = vadd.f32 %v1158, %v1096
    %v1160 = vadd.f32 %v1159, %v1097
    %v1161 = vadd.f32 %v1160, %v1098
    %v1162 = vadd.f32 %v1161, %v1099
    %v1163 = vadd.f32 %v1162, %v1100
    %v1164 = vadd.f32 %v1163, %v1101
    %v1165 = vadd.f32 %v1164, %v1102
    %v1166 = vadd.f32 %v1165, %v1103
    %v1167 = vadd.f32 %v1166, %v1104
    %v1168 = vadd.f32 %v1167, %v1105
    %v1169 = vadd.f32 %v1168, %v1106
    %v1170 = vadd.f32 %v1169, %v1107
    %v1171 = vadd.f32 %v1170, %v1108
    %v1172 = vadd.f32 %v1171, %v1109
    %v1173 = vadd.f32 %v1172, %v1110
    %v1174 = vadd.f32 %v1173, %v1111
    %v1175 = vrot.slane %v1174, 4
    %v1176 = vadd.f32 %v1174, %v1175
    %v1177 = vrot.slane %v1176, 2
    %v1178 = vadd.f32 %v1176, %v1177
    %v1179 = vrot.slane %v1178, 1
    %v1180 = vadd.f32 %v1178, %v1179
    %v1181 = vsel %vm976, %v1180, 0.0
    %1182 = vst [vmem:[#allocation10] sm:$0xff] %v1181
    // Predicated region
    $region18: #{conv_bn_relu.2} parent=1 // pred_check
      _
    $region19: #{conv_bn_relu.2} parent=1 // pred_check_branch
      %1184 = sbr.rel (0) target = $region21
    $region20: #{conv_bn_relu.2} parent=1 // pred_region
      %s1186 = ssub.s32 4096, 4096
      %1187 = vsyncadd [#allocation4], %s1186
      %s1188 = sshll.u32 [#allocation7], 4
      %s1189 = int_to_ptr.vmem [resolvable:$true] %s1188
      %1194 = dma.vmem_to_hbm [thread:$0]  %s1189, 4096, %s2, [#allocation4], 64, 64, 4
    $region21: #{conv_bn_relu.2} parent=1 // pred_fallthru
      _
    // Predicated region
    $region22: #{conv_bn_relu.2} parent=1 // pred_check
      _
    $region23: #{conv_bn_relu.2} parent=1 // pred_check_branch
      %1196 = sbr.rel (0) target = $region25
    $region24: #{conv_bn_relu.2} parent=1 // pred_region
      %s1198 = ssub.s32 128, 128
      %1199 = vsyncadd [#allocation9], %s1198
      %s1201 = sshll.u32 [#allocation8], 4
      %s1202 = int_to_ptr.vmem [resolvable:$true] %s1201
      %1204 = dma.vmem_to_hbm [thread:$0]  %s1202, 128, %s3, [#allocation9]
    $region25: #{conv_bn_relu.2} parent=1 // pred_fallthru
      _
    // Predicated region
    $region26: #{conv_bn_relu.2} parent=1 // pred_check
      _
    $region27: #{conv_bn_relu.2} parent=1 // pred_check_branch
      %1206 = sbr.rel (0) target = $region29
    $region28: #{conv_bn_relu.2} parent=1 // pred_region
      %s1208 = ssub.s32 128, 128
      %1209 = vsyncadd [#allocation9], %s1208
      %s1211 = sshll.u32 [#allocation10], 4
      %s1212 = int_to_ptr.vmem [resolvable:$true] %s1211
      %1214 = dma.vmem_to_hbm [thread:$0]  %s1212, 128, %s4, [#allocation9]
    $region29: #{conv_bn_relu.2} parent=1 // pred_fallthru
      _
    // Predicated region
    $region30: #{conv_bn_relu.2} parent=1 // pred_check
      _
    $region31: #{conv_bn_relu.2} parent=1 // pred_check_branch
      %1216 = sbr.rel (0) target = $region33
    $region32: #{conv_bn_relu.2} parent=1 // pred_region
      %1217 = dma.done [#allocation4], 4096
    $region33: #{conv_bn_relu.2} parent=1 // pred_fallthru
      _
    // Predicated region
    $region34: #{conv_bn_relu.2} parent=1 // pred_check
      _
    $region35: #{conv_bn_relu.2} parent=1 // pred_check_branch
      %1219 = sbr.rel (0) target = $region37
    $region36: #{conv_bn_relu.2} parent=1 // pred_region
      %1220 = dma.done [#allocation9], 128
    $region37: #{conv_bn_relu.2} parent=1 // pred_fallthru
      _
    // Predicated region
    $region38: #{conv_bn_relu.2} parent=1 // pred_check
      _
    $region39: #{conv_bn_relu.2} parent=1 // pred_check_branch
      %1222 = sbr.rel (0) target = $region41
    $region40: #{conv_bn_relu.2} parent=1 // pred_region
      %1223 = dma.done [#allocation9], 128
    $region41: #{conv_bn_relu.2} parent=1 // pred_fallthru
      _
    %1224 = vsyncpa [#allocation3], 1
    %1225 = vsyncpa [#allocation6], 1
    %1226 = vsyncpa [#allocation4], 1
    %1227 = vsyncpa [#allocation9], 1

</llo_original>
